<compile_context>
chip_gen: v7x
topology: tpu7x:2x2x1
jax: 0.10.0
libtpu: 0.0.40
codegen_flags: <defaults>
</compile_context>

<pallas_src>
import jax
import jax.numpy as jnp
from jax.experimental import pallas as pl
from jax.experimental.pallas import tpu as pltpu


def _round_up(n, m):
    return ((n + m - 1) // m) * m


def _pad_to(a, rows, cols):
    r, c = a.shape
    return jnp.pad(a, ((0, rows - r), (0, cols - c)))


def _choose_tb(B, *, target=4096):
    """Pick the batch tile.

    Multiple of 16 (bf16 sublane packing), multiple of 256 when large (MXU row
    granularity), capped at `target`, and aiming for >= 2 grid steps so both
    v7x TensorCores get work (neutral on v5e/v6e).
    """
    if B <= 16:
        return _round_up(max(B, 8), 8)
    half = pl.cdiv(B, 2)
    if half >= 256:
        return min(target, _round_up(half, 256))
    return _round_up(half, 16)


def mlp_acc_kernel(x_ref,
                   w1_ref, b1_ref,
                   w2_ref, b2_ref,
                   w3_ref, b3_ref,
                   w4_ref, b4_ref,
                   o_ref):
    """Whole 4-layer MLP forward for one batch tile, all in VMEM.

    Matmul operands in bf16 (f32 MXU accumulation); bias add / ReLU / sigmoid in f32
    (v5e has no bf16 VPU/EUP path). Only the first O output lanes are stored.
    """
    cdt = w1_ref.dtype

    # Layer 1: Linear + ReLU  (x arrives f32, cast to compute dtype here - free on VPU)
    h = jnp.dot(x_ref[...].astype(cdt), w1_ref[...],
                preferred_element_type=jnp.float32) + b1_ref[...]
    h = jnp.maximum(h, 0.0)

    # Layer 2: Linear + ReLU
    h = jnp.dot(h.astype(cdt), w2_ref[...],
                preferred_element_type=jnp.float32) + b2_ref[...]
    h = jnp.maximum(h, 0.0)

    # Layer 3: Linear + ReLU
    h = jnp.dot(h.astype(cdt), w3_ref[...],
                preferred_element_type=jnp.float32) + b3_ref[...]
    h = jnp.maximum(h, 0.0)

    # Layer 4: Linear + Sigmoid (exp + reciprocal land on the EUP slot, VALU stays free)
    h = jnp.dot(h.astype(cdt), w4_ref[...],
                preferred_element_type=jnp.float32) + b4_ref[...]
    sig = pl.reciprocal(1.0 + jnp.exp(-h), approx=True)

    # Store only the real output columns (padded MXU lanes are dropped in-VMEM,
    # never written to HBM).
    o_ref[...] = sig[:, :o_ref.shape[-1]].astype(o_ref.dtype)


def prepare_params(params, *, compute_dtype=jnp.bfloat16):
    """One-time weight/bias preprocessing (hoisted out of the per-call forward).

    params: dict with w1..w4 stored (in_dim, out_dim) and b1..b4 stored (1, out_dim)
            (transposed relative to PyTorch nn.Linear weights).
    Returns padded, compute-dtype params; hidden and output dims padded to x128.
    """
    w1, b1 = params["w1"], params["b1"]
    w2, b2 = params["w2"], params["b2"]
    w3, b3 = params["w3"], params["b3"]
    w4, b4 = params["w4"], params["b4"]

    F = w1.shape[0]
    H = w1.shape[1]
    O = w4.shape[1]
    HID = _round_up(H, 128)
    OUT = _round_up(O, 128)

    return {
        "w1": _pad_to(w1, F, HID).astype(compute_dtype),
        "b1": _pad_to(b1, 1, HID).astype(jnp.float32),
        "w2": _pad_to(w2, HID, HID).astype(compute_dtype),
        "b2": _pad_to(b2, 1, HID).astype(jnp.float32),
        "w3": _pad_to(w3, HID, HID).astype(compute_dtype),
        "b3": _pad_to(b3, 1, HID).astype(jnp.float32),
        "w4": _pad_to(w4, HID, OUT).astype(compute_dtype),
        "b4": _pad_to(b4, 1, OUT).astype(jnp.float32),
    }


def torcs_mlp_nn_acc_forward(x, prepared, num_output, *, tb=None):
    """Pallas forward pass.

    x: (B, num_features) float32 (fed to the kernel uncast / unpadded).
    prepared: output of prepare_params().
    num_output: number of real output columns (O).
    """
    w1p, b1p = prepared["w1"], prepared["b1"]
    w2p, b2p = prepared["w2"], prepared["b2"]
    w3p, b3p = prepared["w3"], prepared["b3"]
    w4p, b4p = prepared["w4"], prepared["b4"]

    B, F = x.shape
    HID = w1p.shape[1]
    OUT = w4p.shape[1]
    O = num_output

    if tb is None:
        tb = _choose_tb(B)
    num_tiles = pl.cdiv(B, tb)   # edge block's writeback is clipped by Pallas

    grid_spec = pl.GridSpec(
        grid=(num_tiles,),
        in_specs=[
            pl.BlockSpec((tb, F), lambda i: (i, 0)),      # x: streamed per tile (f32)
            pl.BlockSpec((F, HID), lambda i: (0, 0)),     # weights/biases: constant
            pl.BlockSpec((1, HID), lambda i: (0, 0)),     # index_maps -> VMEM-resident
            pl.BlockSpec((HID, HID), lambda i: (0, 0)),   # across all grid steps
            pl.BlockSpec((1, HID), lambda i: (0, 0)),
            pl.BlockSpec((HID, HID), lambda i: (0, 0)),
            pl.BlockSpec((1, HID), lambda i: (0, 0)),
            pl.BlockSpec((HID, OUT), lambda i: (0, 0)),
            pl.BlockSpec((1, OUT), lambda i: (0, 0)),
        ],
        # Unpadded output: last block dim == full array dim, so no 128-divisibility
        # requirement; avoids the 16x-inflated padded writeback.
        out_specs=pl.BlockSpec((tb, O), lambda i: (i, 0)),
    )

    out = pl.pallas_call(
        mlp_acc_kernel,
        out_shape=jax.ShapeDtypeStruct((B, O), jnp.float32),
        grid_spec=grid_spec,
        compiler_params=pltpu.CompilerParams(
            dimension_semantics=("parallel",)),
    )(x, w1p, b1p, w2p, b2p, w3p, b3p, w4p, b4p)

    return out


def init_params(key, num_features, num_nodes_hidden, num_output):
    """Deterministic init mirroring nn.Linear shapes (weights stored transposed)."""
    def linear(k, fan_in, fan_out):
        kw, kb = jax.random.split(k)
        bound = 1.0 / jnp.sqrt(fan_in)
        w = jax.random.uniform(kw, (fan_in, fan_out), jnp.float32, -bound, bound)
        b = jax.random.uniform(kb, (1, fan_out), jnp.float32, -bound, bound)
        return w, b

    k1, k2, k3, k4 = jax.random.split(key, 4)
    w1, b1 = linear(k1, num_features, num_nodes_hidden)
    w2, b2 = linear(k2, num_nodes_hidden, num_nodes_hidden)
    w3, b3 = linear(k3, num_nodes_hidden, num_nodes_hidden)
    w4, b4 = linear(k4, num_nodes_hidden, num_output)
    return {"w1": w1, "b1": b1, "w2": w2, "b2": b2,
            "w3": w3, "b3": b3, "w4": w4, "b4": b4}


def reference_forward(x, params, *, compute_dtype=jnp.bfloat16):
    """Pure-JAX reference with the same matmul compute dtype as the kernel."""
    def lin(h, w, b):
        return jnp.dot(h.astype(compute_dtype), w.astype(compute_dtype),
                       preferred_element_type=jnp.float32) + b
    h = jax.nn.relu(lin(x, params["w1"], params["b1"]))
    h = jax.nn.relu(lin(h, params["w2"], params["b2"]))
    h = jax.nn.relu(lin(h, params["w3"], params["b3"]))
    return jax.nn.sigmoid(lin(h, params["w4"], params["b4"]))


def reference_forward_f32(x, params):
    """Full-precision reference matching the original PyTorch module semantics."""
    h = jax.nn.relu(x @ params["w1"] + params["b1"])
    h = jax.nn.relu(h @ params["w2"] + params["b2"])
    h = jax.nn.relu(h @ params["w3"] + params["b3"])
    return jax.nn.sigmoid(h @ params["w4"] + params["b4"])


if __name__ == "__main__":
    key = jax.random.PRNGKey(0)
    k_params, k_x = jax.random.split(key)

    batch = 200            # deliberately not a multiple of the tile size
    num_features = 32
    num_nodes_hidden = 64
    num_output = 8

    params = init_params(k_params, num_features, num_nodes_hidden, num_output)
    x = jax.random.normal(k_x, (batch, num_features), jnp.float32)

    # One-time parameter prep (padding + bf16 cast), hoisted out of the forward.
    prepared = prepare_params(params)

    y = torcs_mlp_nn_acc_forward(x, prepared, num_output)
    y = jax.block_until_ready(y)

    assert y.shape == (batch, num_output)

    # Check against a reference using the same bf16 matmul path (kernel additionally
    # uses the approximate EUP reciprocal in the sigmoid, hence the small tolerance).
    y_ref = reference_forward(x, params)
    assert jnp.allclose(y, y_ref, atol=5e-3, rtol=5e-3), "mismatch vs bf16 reference"

    # Sanity check against the full-f32 reference (original module semantics).
    y_ref_f32 = reference_forward_f32(x, params)
    assert jnp.allclose(y, y_ref_f32, atol=5e-2), "mismatch vs f32 reference"

    print("KERNEL_OK")
</pallas_src>

<mosaic_0001>
module attributes {stable_mosaic.version = 11 : i64} {
  func.func @mlp_acc_kernel(%arg0: i32, %arg1: memref<112x32xf32, #tpu.memory_space<vmem>>, %arg2: memref<32x128xbf16, #tpu.memory_space<vmem>>, %arg3: memref<1x128xf32, #tpu.memory_space<vmem>>, %arg4: memref<128x128xbf16, #tpu.memory_space<vmem>>, %arg5: memref<1x128xf32, #tpu.memory_space<vmem>>, %arg6: memref<128x128xbf16, #tpu.memory_space<vmem>>, %arg7: memref<1x128xf32, #tpu.memory_space<vmem>>, %arg8: memref<128x128xbf16, #tpu.memory_space<vmem>>, %arg9: memref<1x128xf32, #tpu.memory_space<vmem>>, %arg10: memref<112x8xf32, #tpu.memory_space<vmem>>) attributes {dimension_semantics = [#tpu.dimension_semantics<parallel>], iteration_bounds = array<i64: 2>, scalar_prefetch = 0 : i64, scratch_operands = 0 : i64, tpu.core_type = #tpu.core_type<tc>, window_params = [{transform_indices = @transform_0, window_bounds = array<i64: 112, 32>}, {pipeline_mode = #tpu.pipeline_mode<synchronous>, transform_indices = @transform_1, window_bounds = array<i64: 32, 128>}, {pipeline_mode = #tpu.pipeline_mode<synchronous>, transform_indices = @transform_2, window_bounds = array<i64: 1, 128>}, {pipeline_mode = #tpu.pipeline_mode<synchronous>, transform_indices = @transform_3, window_bounds = array<i64: 128, 128>}, {pipeline_mode = #tpu.pipeline_mode<synchronous>, transform_indices = @transform_4, window_bounds = array<i64: 1, 128>}, {pipeline_mode = #tpu.pipeline_mode<synchronous>, transform_indices = @transform_5, window_bounds = array<i64: 128, 128>}, {pipeline_mode = #tpu.pipeline_mode<synchronous>, transform_indices = @transform_6, window_bounds = array<i64: 1, 128>}, {pipeline_mode = #tpu.pipeline_mode<synchronous>, transform_indices = @transform_7, window_bounds = array<i64: 128, 128>}, {pipeline_mode = #tpu.pipeline_mode<synchronous>, transform_indices = @transform_8, window_bounds = array<i64: 1, 128>}, {transform_indices = @transform_9, window_bounds = array<i64: 112, 8>}]} {
    %c0 = arith.constant 0 : index
    %c0_0 = arith.constant 0 : index
    %0 = vector.load %arg1[%c0, %c0_0] : memref<112x32xf32, #tpu.memory_space<vmem>>, vector<112x32xf32>
    %1 = arith.truncf %0 : vector<112x32xf32> to vector<112x32xbf16>
    %c0_1 = arith.constant 0 : index
    %c0_2 = arith.constant 0 : index
    %2 = vector.load %arg2[%c0_1, %c0_2] : memref<32x128xbf16, #tpu.memory_space<vmem>>, vector<32x128xbf16>
    %cst = arith.constant dense<0.000000e+00> : vector<112x128xf32>
    %3 = tpu.matmul %1, %2, %cst {dimension_numbers = #tpu.dot_dimension_numbers<[1], [0], [0], [1], [0, 0, 1, 1], [], []>} : vector<112x32xbf16>, vector<32x128xbf16>, vector<112x128xf32> -> vector<112x128xf32>
    %c0_3 = arith.constant 0 : index
    %c0_4 = arith.constant 0 : index
    %4 = vector.load %arg3[%c0_3, %c0_4] : memref<1x128xf32, #tpu.memory_space<vmem>>, vector<1x128xf32>
    %5 = vector.broadcast %4 : vector<1x128xf32> to vector<112x128xf32>
    %6 = arith.addf %3, %5 : vector<112x128xf32>
    %cst_5 = arith.constant 0.000000e+00 : f32
    %7 = vector.broadcast %cst_5 : f32 to vector<112x128xf32>
    %8 = arith.maximumf %6, %7 : vector<112x128xf32>
    %9 = arith.truncf %8 : vector<112x128xf32> to vector<112x128xbf16>
    %c0_6 = arith.constant 0 : index
    %c0_7 = arith.constant 0 : index
    %10 = vector.load %arg4[%c0_6, %c0_7] : memref<128x128xbf16, #tpu.memory_space<vmem>>, vector<128x128xbf16>
    %cst_8 = arith.constant dense<0.000000e+00> : vector<112x128xf32>
    %11 = tpu.matmul %9, %10, %cst_8 {dimension_numbers = #tpu.dot_dimension_numbers<[1], [0], [0], [1], [0, 0, 1, 1], [], []>} : vector<112x128xbf16>, vector<128x128xbf16>, vector<112x128xf32> -> vector<112x128xf32>
    %c0_9 = arith.constant 0 : index
    %c0_10 = arith.constant 0 : index
    %12 = vector.load %arg5[%c0_9, %c0_10] : memref<1x128xf32, #tpu.memory_space<vmem>>, vector<1x128xf32>
    %13 = vector.broadcast %12 : vector<1x128xf32> to vector<112x128xf32>
    %14 = arith.addf %11, %13 : vector<112x128xf32>
    %cst_11 = arith.constant 0.000000e+00 : f32
    %15 = vector.broadcast %cst_11 : f32 to vector<112x128xf32>
    %16 = arith.maximumf %14, %15 : vector<112x128xf32>
    %17 = arith.truncf %16 : vector<112x128xf32> to vector<112x128xbf16>
    %c0_12 = arith.constant 0 : index
    %c0_13 = arith.constant 0 : index
    %18 = vector.load %arg6[%c0_12, %c0_13] : memref<128x128xbf16, #tpu.memory_space<vmem>>, vector<128x128xbf16>
    %cst_14 = arith.constant dense<0.000000e+00> : vector<112x128xf32>
    %19 = tpu.matmul %17, %18, %cst_14 {dimension_numbers = #tpu.dot_dimension_numbers<[1], [0], [0], [1], [0, 0, 1, 1], [], []>} : vector<112x128xbf16>, vector<128x128xbf16>, vector<112x128xf32> -> vector<112x128xf32>
    %c0_15 = arith.constant 0 : index
    %c0_16 = arith.constant 0 : index
    %20 = vector.load %arg7[%c0_15, %c0_16] : memref<1x128xf32, #tpu.memory_space<vmem>>, vector<1x128xf32>
    %21 = vector.broadcast %20 : vector<1x128xf32> to vector<112x128xf32>
    %22 = arith.addf %19, %21 : vector<112x128xf32>
    %cst_17 = arith.constant 0.000000e+00 : f32
    %23 = vector.broadcast %cst_17 : f32 to vector<112x128xf32>
    %24 = arith.maximumf %22, %23 : vector<112x128xf32>
    %25 = arith.truncf %24 : vector<112x128xf32> to vector<112x128xbf16>
    %c0_18 = arith.constant 0 : index
    %c0_19 = arith.constant 0 : index
    %26 = vector.load %arg8[%c0_18, %c0_19] : memref<128x128xbf16, #tpu.memory_space<vmem>>, vector<128x128xbf16>
    %cst_20 = arith.constant dense<0.000000e+00> : vector<112x128xf32>
    %27 = tpu.matmul %25, %26, %cst_20 {dimension_numbers = #tpu.dot_dimension_numbers<[1], [0], [0], [1], [0, 0, 1, 1], [], []>} : vector<112x128xbf16>, vector<128x128xbf16>, vector<112x128xf32> -> vector<112x128xf32>
    %c0_21 = arith.constant 0 : index
    %c0_22 = arith.constant 0 : index
    %28 = vector.load %arg9[%c0_21, %c0_22] : memref<1x128xf32, #tpu.memory_space<vmem>>, vector<1x128xf32>
    %29 = vector.broadcast %28 : vector<1x128xf32> to vector<112x128xf32>
    %30 = arith.addf %27, %29 : vector<112x128xf32>
    %cst_23 = arith.constant 0.000000e+00 : f32
    %31 = vector.broadcast %cst_23 : f32 to vector<112x128xf32>
    %32 = arith.subf %31, %30 : vector<112x128xf32>
    %33 = math.exp %32 : vector<112x128xf32>
    %cst_24 = arith.constant 1.000000e+00 : f32
    %34 = vector.broadcast %cst_24 : f32 to vector<112x128xf32>
    %35 = arith.addf %34, %33 : vector<112x128xf32>
    %36 = tpu.reciprocal %35 {approx = true} : vector<112x128xf32> -> vector<112x128xf32>
    %37 = vector.extract_strided_slice %36 {offsets = [0, 0], sizes = [112, 8], strides = [1, 1]} : vector<112x128xf32> to vector<112x8xf32>
    %c0_25 = arith.constant 0 : index
    %c0_26 = arith.constant 0 : index
    %38 = vector.load %arg10[%c0_25, %c0_26] : memref<112x8xf32, #tpu.memory_space<vmem>>, vector<112x8xf32>
    tpu.vector_store %arg10[%c0_25, %c0_26], %37 {strides = array<i32>} : memref<112x8xf32, #tpu.memory_space<vmem>>, vector<112x8xf32>,
    return
  }
  func.func @transform_0(%arg0: i32) -> (i32, i32) {
    %c0_i32 = arith.constant 0 : i32
    %c0_i32_0 = arith.constant 0 : i32
    return %arg0, %c0_i32 : i32, i32
  }
  func.func @transform_1(%arg0: i32) -> (i32, i32) {
    %c0_i32 = arith.constant 0 : i32
    %c0_i32_0 = arith.constant 0 : i32
    %c0_i32_1 = arith.constant 0 : i32
    return %c0_i32, %c0_i32_0 : i32, i32
  }
  func.func @transform_2(%arg0: i32) -> (i32, i32) {
    %c0_i32 = arith.constant 0 : i32
    %c0_i32_0 = arith.constant 0 : i32
    %c0_i32_1 = arith.constant 0 : i32
    return %c0_i32, %c0_i32_0 : i32, i32
  }
  func.func @transform_3(%arg0: i32) -> (i32, i32) {
    %c0_i32 = arith.constant 0 : i32
    %c0_i32_0 = arith.constant 0 : i32
    %c0_i32_1 = arith.constant 0 : i32
    return %c0_i32, %c0_i32_0 : i32, i32
  }
  func.func @transform_4(%arg0: i32) -> (i32, i32) {
    %c0_i32 = arith.constant 0 : i32
    %c0_i32_0 = arith.constant 0 : i32
    %c0_i32_1 = arith.constant 0 : i32
    return %c0_i32, %c0_i32_0 : i32, i32
  }
  func.func @transform_5(%arg0: i32) -> (i32, i32) {
    %c0_i32 = arith.constant 0 : i32
    %c0_i32_0 = arith.constant 0 : i32
    %c0_i32_1 = arith.constant 0 : i32
    return %c0_i32, %c0_i32_0 : i32, i32
  }
  func.func @transform_6(%arg0: i32) -> (i32, i32) {
    %c0_i32 = arith.constant 0 : i32
    %c0_i32_0 = arith.constant 0 : i32
    %c0_i32_1 = arith.constant 0 : i32
    return %c0_i32, %c0_i32_0 : i32, i32
  }
  func.func @transform_7(%arg0: i32) -> (i32, i32) {
    %c0_i32 = arith.constant 0 : i32
    %c0_i32_0 = arith.constant 0 : i32
    %c0_i32_1 = arith.constant 0 : i32
    return %c0_i32, %c0_i32_0 : i32, i32
  }
  func.func @transform_8(%arg0: i32) -> (i32, i32) {
    %c0_i32 = arith.constant 0 : i32
    %c0_i32_0 = arith.constant 0 : i32
    %c0_i32_1 = arith.constant 0 : i32
    return %c0_i32, %c0_i32_0 : i32, i32
  }
  func.func @transform_9(%arg0: i32) -> (i32, i32) {
    %c0_i32 = arith.constant 0 : i32
    %c0_i32_0 = arith.constant 0 : i32
    return %arg0, %c0_i32 : i32, i32
  }
}

</mosaic_0001>

<llo_original>
// kernel: tpu_custom_call.1
$region0: #{tpu_custom_call.1}
  #allocation0 [shape = 'u32[]', space=smem, size = 0x4, offset = 0x4, fixed_abs, tag = 'smem constant byte address 0x4 - core index']
  #allocation1 [shape = 'u32[144,128]{1,0:T(1,128)}', space=vmem, size = 0x12000, scoped, tag = 'internal scratch']
  %s0 = inlined_call_operand.vmem [shape: f32[200,32], index: 0, kind: input, shape index: {}]
  %s1 = inlined_call_operand.vmem [shape: bf16[32,128], index: 1, kind: input, shape index: {}]
  %s2 = inlined_call_operand.vmem [shape: f32[1,128], index: 2, kind: input, shape index: {}]
  %s3 = inlined_call_operand.vmem [shape: bf16[128,128], index: 3, kind: input, shape index: {}]
  %s4 = inlined_call_operand.vmem [shape: f32[1,128], index: 4, kind: input, shape index: {}]
  %s5 = inlined_call_operand.vmem [shape: bf16[128,128], index: 5, kind: input, shape index: {}]
  %s6 = inlined_call_operand.vmem [shape: f32[1,128], index: 6, kind: input, shape index: {}]
  %s7 = inlined_call_operand.vmem [shape: bf16[128,128], index: 7, kind: input, shape index: {}]
  %s8 = inlined_call_operand.vmem [shape: f32[1,128], index: 8, kind: input, shape index: {}]
  %s9 = inlined_call_operand.vmem [shape: f32[200,8], index: 9, kind: output, shape index: {}]
  %s10 = sld [smem:[#allocation0]]
  $region117: #{tpu_custom_call.1} parent=0
    _
  %s12 = ssub.s32 1, %s10
  %s13 = scalar_select 0, %s12, %s10
  $region1: #{tpu_custom_call.1} parent=0
    #allocation2 [shape = 'u8[114688]{0}', space=vmem, size = 0x1c000, scoped, tag = 'output window, operand 0']
    loop: start=0, step=1, limit=4
    $region2: #{tpu_custom_call.1} parent=1 // loop_pre_header
      _
    $region3: #{tpu_custom_call.1} parent=1 // loop_header
      %s15 = sphi 0, %s19
      %p16 = scmp.ge.s32.totalorder %s15, 4
      %s25 = sphi 0, %s27
      %s28 = sphi 0, %s25
      %s29 = sphi 0, %s28
      %s45 = sphi 0, %s29
      %s49 = sphi 0, %s49
      %s51 = sphi 0, %s49
      %s52 = sphi 0, %s51
      %s66 = sphi 0, %s52
      %s70 = sphi 0, %s70
      %s72 = sphi 0, %s70
      %s73 = sphi 0, %s72
      %s87 = sphi 0, %s73
      %s91 = sphi 0, %s91
      %s93 = sphi 0, %s91
      %s94 = sphi 0, %s93
      %s108 = sphi 0, %s94
      %s112 = sphi 0, %s112
      %s114 = sphi 0, %s112
      %s115 = sphi 0, %s114
      %s129 = sphi 0, %s115
      %s133 = sphi 0, %s133
      %s135 = sphi 0, %s133
      %s136 = sphi 0, %s135
      %s150 = sphi 0, %s136
      %s154 = sphi 0, %s154
      %s156 = sphi 0, %s154
      %s157 = sphi 0, %s156
      %s171 = sphi 0, %s157
      %s175 = sphi 0, %s175
      %s177 = sphi 0, %s175
      %s178 = sphi 0, %s177
      %s192 = sphi 0, %s178
      %s196 = sphi 0, %s196
      %s198 = sphi 0, %s196
      %s199 = sphi 0, %s198
      %s213 = sphi 0, %s199
      %s219 = sphi 0, %s221
      %s222 = sphi 0, %s219
      %s223 = sphi 0, %s222
      %s239 = sphi 0, %s223
    $region4: #{tpu_custom_call.1} parent=1 // loop_header_branch
      %18 = sbr.rel (%p16) target = $region8
    $region5: #{tpu_custom_call.1} parent=1 // loop_body
      %s20 = ssub.s32 %s15, 1
      %s21 = ssub.s32 %s15, 2
      %s22 = sadd.s32 %s15, 1
      %s23 = ssub.s32 %s15, %s22
      %p24 = scmp.eq.s32.totalorder %s23, 0
      %s26 = sadd.s32 %s25, 1
      %s27 = scalar_select %p24, %s25, %s26
      %p30 = pneg %p24
      %p31 = scmp.eq.s32.totalorder %s15, 1
      %p32 = por %p30, %p31
      %p33 = scmp.ne.s32.totalorder %s25, %s28
      %p34 = scmp.eq.s32.totalorder %s15, 0
      %p35 = por %p33, %p34
      %p36 = scmp.ne.s32.totalorder %s25, %s28
      %p37 = scmp.eq.s32.totalorder %s20, 1
      %p38 = por %p36, %p37
      %p39 = scmp.ne.s32.totalorder %s28, %s29
      %p40 = scmp.eq.s32.totalorder %s20, 0
      %p41 = por %p39, %p40
      %p42 = scmp.ne.s32.totalorder %s28, %s29
      %p43 = scmp.eq.s32.totalorder %s21, 1
      %p44 = por %p42, %p43
      %p46 = scmp.ne.s32.totalorder %s29, %s45
      %p47 = scmp.eq.s32.totalorder %s21, 0
      %p48 = por %p46, %p47
      %s50 = sadd.s32 %s49, 1
      %p53 = scmp.eq.s32.totalorder %s15, 1
      %p54 = scmp.ne.s32.totalorder %s49, %s51
      %p55 = scmp.eq.s32.totalorder %s15, 0
      %p56 = por %p54, %p55
      %p57 = scmp.ne.s32.totalorder %s49, %s51
      %p58 = scmp.eq.s32.totalorder %s20, 1
      %p59 = por %p57, %p58
      %p60 = scmp.ne.s32.totalorder %s51, %s52
      %p61 = scmp.eq.s32.totalorder %s20, 0
      %p62 = por %p60, %p61
      %p63 = scmp.ne.s32.totalorder %s51, %s52
      %p64 = scmp.eq.s32.totalorder %s21, 1
      %p65 = por %p63, %p64
      %p67 = scmp.ne.s32.totalorder %s52, %s66
      %p68 = scmp.eq.s32.totalorder %s21, 0
      %p69 = por %p67, %p68
      %s71 = sadd.s32 %s70, 1
      %p74 = scmp.eq.s32.totalorder %s15, 1
      %p75 = scmp.ne.s32.totalorder %s70, %s72
      %p76 = scmp.eq.s32.totalorder %s15, 0
      %p77 = por %p75, %p76
      %p78 = scmp.ne.s32.totalorder %s70, %s72
      %p79 = scmp.eq.s32.totalorder %s20, 1
      %p80 = por %p78, %p79
      %p81 = scmp.ne.s32.totalorder %s72, %s73
      %p82 = scmp.eq.s32.totalorder %s20, 0
      %p83 = por %p81, %p82
      %p84 = scmp.ne.s32.totalorder %s72, %s73
      %p85 = scmp.eq.s32.totalorder %s21, 1
      %p86 = por %p84, %p85
      %p88 = scmp.ne.s32.totalorder %s73, %s87
      %p89 = scmp.eq.s32.totalorder %s21, 0
      %p90 = por %p88, %p89
      %s92 = sadd.s32 %s91, 1
      %p95 = scmp.eq.s32.totalorder %s15, 1
      %p96 = scmp.ne.s32.totalorder %s91, %s93
      %p97 = scmp.eq.s32.totalorder %s15, 0
      %p98 = por %p96, %p97
      %p99 = scmp.ne.s32.totalorder %s91, %s93
      %p100 = scmp.eq.s32.totalorder %s20, 1
      %p101 = por %p99, %p100
      %p102 = scmp.ne.s32.totalorder %s93, %s94
      %p103 = scmp.eq.s32.totalorder %s20, 0
      %p104 = por %p102, %p103
      %p105 = scmp.ne.s32.totalorder %s93, %s94
      %p106 = scmp.eq.s32.totalorder %s21, 1
      %p107 = por %p105, %p106
      %p109 = scmp.ne.s32.totalorder %s94, %s108
      %p110 = scmp.eq.s32.totalorder %s21, 0
      %p111 = por %p109, %p110
      %s113 = sadd.s32 %s112, 1
      %p116 = scmp.eq.s32.totalorder %s15, 1
      %p117 = scmp.ne.s32.totalorder %s112, %s114
      %p118 = scmp.eq.s32.totalorder %s15, 0
      %p119 = por %p117, %p118
      %p120 = scmp.ne.s32.totalorder %s112, %s114
      %p121 = scmp.eq.s32.totalorder %s20, 1
      %p122 = por %p120, %p121
      %p123 = scmp.ne.s32.totalorder %s114, %s115
      %p124 = scmp.eq.s32.totalorder %s20, 0
      %p125 = por %p123, %p124
      %p126 = scmp.ne.s32.totalorder %s114, %s115
      %p127 = scmp.eq.s32.totalorder %s21, 1
      %p128 = por %p126, %p127
      %p130 = scmp.ne.s32.totalorder %s115, %s129
      %p131 = scmp.eq.s32.totalorder %s21, 0
      %p132 = por %p130, %p131
      %s134 = sadd.s32 %s133, 1
      %p137 = scmp.eq.s32.totalorder %s15, 1
      %p138 = scmp.ne.s32.totalorder %s133, %s135
      %p139 = scmp.eq.s32.totalorder %s15, 0
      %p140 = por %p138, %p139
      %p141 = scmp.ne.s32.totalorder %s133, %s135
      %p142 = scmp.eq.s32.totalorder %s20, 1
      %p143 = por %p141, %p142
      %p144 = scmp.ne.s32.totalorder %s135, %s136
      %p145 = scmp.eq.s32.totalorder %s20, 0
      %p146 = por %p144, %p145
      %p147 = scmp.ne.s32.totalorder %s135, %s136
      %p148 = scmp.eq.s32.totalorder %s21, 1
      %p149 = por %p147, %p148
      %p151 = scmp.ne.s32.totalorder %s136, %s150
      %p152 = scmp.eq.s32.totalorder %s21, 0
      %p153 = por %p151, %p152
      %s155 = sadd.s32 %s154, 1
      %p158 = scmp.eq.s32.totalorder %s15, 1
      %p159 = scmp.ne.s32.totalorder %s154, %s156
      %p160 = scmp.eq.s32.totalorder %s15, 0
      %p161 = por %p159, %p160
      %p162 = scmp.ne.s32.totalorder %s154, %s156
      %p163 = scmp.eq.s32.totalorder %s20, 1
      %p164 = por %p162, %p163
      %p165 = scmp.ne.s32.totalorder %s156, %s157
      %p166 = scmp.eq.s32.totalorder %s20, 0
      %p167 = por %p165, %p166
      %p168 = scmp.ne.s32.totalorder %s156, %s157
      %p169 = scmp.eq.s32.totalorder %s21, 1
      %p170 = por %p168, %p169
      %p172 = scmp.ne.s32.totalorder %s157, %s171
      %p173 = scmp.eq.s32.totalorder %s21, 0
      %p174 = por %p172, %p173
      %s176 = sadd.s32 %s175, 1
      %p179 = scmp.eq.s32.totalorder %s15, 1
      %p180 = scmp.ne.s32.totalorder %s175, %s177
      %p181 = scmp.eq.s32.totalorder %s15, 0
      %p182 = por %p180, %p181
      %p183 = scmp.ne.s32.totalorder %s175, %s177
      %p184 = scmp.eq.s32.totalorder %s20, 1
      %p185 = por %p183, %p184
      %p186 = scmp.ne.s32.totalorder %s177, %s178
      %p187 = scmp.eq.s32.totalorder %s20, 0
      %p188 = por %p186, %p187
      %p189 = scmp.ne.s32.totalorder %s177, %s178
      %p190 = scmp.eq.s32.totalorder %s21, 1
      %p191 = por %p189, %p190
      %p193 = scmp.ne.s32.totalorder %s178, %s192
      %p194 = scmp.eq.s32.totalorder %s21, 0
      %p195 = por %p193, %p194
      %s197 = sadd.s32 %s196, 1
      %p200 = scmp.eq.s32.totalorder %s15, 1
      %p201 = scmp.ne.s32.totalorder %s196, %s198
      %p202 = scmp.eq.s32.totalorder %s15, 0
      %p203 = por %p201, %p202
      %p204 = scmp.ne.s32.totalorder %s196, %s198
      %p205 = scmp.eq.s32.totalorder %s20, 1
      %p206 = por %p204, %p205
      %p207 = scmp.ne.s32.totalorder %s198, %s199
      %p208 = scmp.eq.s32.totalorder %s20, 0
      %p209 = por %p207, %p208
      %p210 = scmp.ne.s32.totalorder %s198, %s199
      %p211 = scmp.eq.s32.totalorder %s21, 1
      %p212 = por %p210, %p211
      %p214 = scmp.ne.s32.totalorder %s199, %s213
      %p215 = scmp.eq.s32.totalorder %s21, 0
      %p216 = por %p214, %p215
      %s217 = ssub.s32 %s15, %s22
      %p218 = scmp.eq.s32.totalorder %s217, 0
      %s220 = sadd.s32 %s219, 1
      %s221 = scalar_select %p218, %s219, %s220
      %p224 = pneg %p218
      %p225 = scmp.eq.s32.totalorder %s15, 1
      %p226 = por %p224, %p225
      %p227 = scmp.ne.s32.totalorder %s219, %s222
      %p228 = scmp.eq.s32.totalorder %s15, 0
      %p229 = por %p227, %p228
      %p230 = scmp.ne.s32.totalorder %s219, %s222
      %p231 = scmp.eq.s32.totalorder %s20, 1
      %p232 = por %p230, %p231
      %p233 = scmp.ne.s32.totalorder %s222, %s223
      %p234 = scmp.eq.s32.totalorder %s20, 0
      %p235 = por %p233, %p234
      %p236 = scmp.ne.s32.totalorder %s222, %s223
      %p237 = scmp.eq.s32.totalorder %s21, 1
      %p238 = por %p236, %p237
      %p240 = scmp.ne.s32.totalorder %s223, %s239
      %p241 = scmp.eq.s32.totalorder %s21, 0
      %p242 = por %p240, %p241
      %p243 = scmp.le.s32.totalorder 1, %s15
      %p244 = scmp.lt.s32.totalorder %s15, 3
      %p245 = pnand %p243, %p244
      %p246 = pneg %p245
      // Predicated region
      $region9: #{tpu_custom_call.1} parent=5 // pred_check
        _
      $region10: #{tpu_custom_call.1} parent=5 // pred_check_branch
        %248 = sbr.rel (%p245) target = $region12
      $region11: #{tpu_custom_call.1} parent=5 // pred_region
        %s249 = ssub.s32 %s15, 1
        // Predicated region
        $region13: #{tpu_custom_call.1} parent=11 // pred_check
          %p250 = pneg %p62
        $region14: #{tpu_custom_call.1} parent=11 // pred_check_branch
          %252 = sbr.rel (%p250) target = $region16
        $region15: #{tpu_custom_call.1} parent=11 // pred_region
          _
        $region16: #{tpu_custom_call.1} parent=11 // pred_fallthru
          _
        // Predicated region
        $region17: #{tpu_custom_call.1} parent=11 // pred_check
          %p253 = pneg %p83
        $region18: #{tpu_custom_call.1} parent=11 // pred_check_branch
          %255 = sbr.rel (%p253) target = $region20
        $region19: #{tpu_custom_call.1} parent=11 // pred_region
          _
        $region20: #{tpu_custom_call.1} parent=11 // pred_fallthru
          _
        // Predicated region
        $region21: #{tpu_custom_call.1} parent=11 // pred_check
          %p256 = pneg %p104
        $region22: #{tpu_custom_call.1} parent=11 // pred_check_branch
          %258 = sbr.rel (%p256) target = $region24
        $region23: #{tpu_custom_call.1} parent=11 // pred_region
          _
        $region24: #{tpu_custom_call.1} parent=11 // pred_fallthru
          _
        // Predicated region
        $region25: #{tpu_custom_call.1} parent=11 // pred_check
          %p259 = pneg %p125
        $region26: #{tpu_custom_call.1} parent=11 // pred_check_branch
          %261 = sbr.rel (%p259) target = $region28
        $region27: #{tpu_custom_call.1} parent=11 // pred_region
          _
        $region28: #{tpu_custom_call.1} parent=11 // pred_fallthru
          _
        // Predicated region
        $region29: #{tpu_custom_call.1} parent=11 // pred_check
          %p262 = pneg %p146
        $region30: #{tpu_custom_call.1} parent=11 // pred_check_branch
          %264 = sbr.rel (%p262) target = $region32
        $region31: #{tpu_custom_call.1} parent=11 // pred_region
          _
        $region32: #{tpu_custom_call.1} parent=11 // pred_fallthru
          _
        // Predicated region
        $region33: #{tpu_custom_call.1} parent=11 // pred_check
          %p265 = pneg %p167
        $region34: #{tpu_custom_call.1} parent=11 // pred_check_branch
          %267 = sbr.rel (%p265) target = $region36
        $region35: #{tpu_custom_call.1} parent=11 // pred_region
          _
        $region36: #{tpu_custom_call.1} parent=11 // pred_fallthru
          _
        // Predicated region
        $region37: #{tpu_custom_call.1} parent=11 // pred_check
          %p268 = pneg %p188
        $region38: #{tpu_custom_call.1} parent=11 // pred_check_branch
          %270 = sbr.rel (%p268) target = $region40
        $region39: #{tpu_custom_call.1} parent=11 // pred_region
          _
        $region40: #{tpu_custom_call.1} parent=11 // pred_fallthru
          _
        // Predicated region
        $region41: #{tpu_custom_call.1} parent=11 // pred_check
          %p271 = pneg %p209
        $region42: #{tpu_custom_call.1} parent=11 // pred_check_branch
          %273 = sbr.rel (%p271) target = $region44
        $region43: #{tpu_custom_call.1} parent=11 // pred_region
          _
        $region44: #{tpu_custom_call.1} parent=11 // pred_fallthru
          _
      $region12: #{tpu_custom_call.1} parent=5 // pred_fallthru
        _
      %p274 = scmp.lt.s32.totalorder %s15, 2
      // Predicated region
      $region45: #{tpu_custom_call.1} parent=5 // pred_check
        %p275 = pneg %p274
      $region46: #{tpu_custom_call.1} parent=5 // pred_check_branch
        %277 = sbr.rel (%p275) target = $region48
      $region47: #{tpu_custom_call.1} parent=5 // pred_region
        // Predicated region
        $region49: #{tpu_custom_call.1} parent=47 // pred_check
          %p278 = pneg %p35
        $region50: #{tpu_custom_call.1} parent=47 // pred_check_branch
          %280 = sbr.rel (%p278) target = $region52
        $region51: #{tpu_custom_call.1} parent=47 // pred_region
          %s281 = smul.u32 14, %s15
          %s282 = ssub.s32 25, %s281
          %p283 = scmp.lt.s32.totalorder %s282, 14
          %s284 = scalar_select %p283, %s282, 14
          %s285 = smul.u32 128, %s284
          %p286 = scmp.lt.s32.totalorder %s281, 24
          %s287 = scalar_select %p286, %s281, 24
          %s288 = smul.addr %s287, 8
          %s289 = scalar_lea.vmem %s0, %s288
          %s290 = smul.u32 14, %s15
          %s291 = ssub.s32 25, %s290
          %p292 = scmp.lt.s32.totalorder %s291, 14
          %s293 = scalar_select %p292, %s291, 14
          %s294 = smul.u32 128, %s293
        $region52: #{tpu_custom_call.1} parent=47 // pred_fallthru
          _
      $region48: #{tpu_custom_call.1} parent=5 // pred_fallthru
        _
      %p295 = scmp.le.s32.totalorder 1, %s15
      %p296 = scmp.lt.s32.totalorder %s15, 3
      %p297 = pnand %p295, %p296
      %p298 = pneg %p297
      // Predicated region
      $region53: #{tpu_custom_call.1} parent=5 // pred_check
        _
      $region54: #{tpu_custom_call.1} parent=5 // pred_check_branch
        %300 = sbr.rel (%p297) target = $region56
      $region55: #{tpu_custom_call.1} parent=5 // pred_region
        %s301 = ssub.s32 %s15, 1
        %s302 = smul.u32 14, %s20
        %s303 = ssub.s32 25, %s302
        %p304 = scmp.lt.s32.totalorder %s303, 14
        %s305 = scalar_select %p304, %s303, 14
        %s306 = smul.u32 128, %s305
        %p307 = scmp.lt.s32.totalorder %s302, 24
        %s308 = scalar_select %p307, %s302, 24
        %s309 = smul.addr %s308, 8
        %s310 = scalar_lea.vmem %s0, %s309
        %p311 = pneg %p41
        %p312 = pneg %p38
        %p313 = pneg %p62
        %p314 = pneg %p59
        %p315 = pneg %p83
        %p316 = pneg %p80
        %p317 = pneg %p104
        %p318 = pneg %p101
        %p319 = pneg %p125
        %p320 = pneg %p122
        %p321 = pneg %p146
        %p322 = pneg %p143
        %p323 = pneg %p167
        %p324 = pneg %p164
        %p325 = pneg %p188
        %p326 = pneg %p185
        %p327 = pneg %p209
        %p328 = pneg %p206
        %p329 = pneg %p235
        %p330 = pneg %p232
        %s331 = sand.u32 %s222, 1
        %s332 = sand.u32 %s222, 1
        %s333 = smul.addr %s332, 112
        %s334 = scalar_lea.vmem [#allocation2], %s333
        %s335 = smul.u32 14, %s20
        %s336 = ssub.s32 25, %s335
        %p337 = scmp.lt.s32.totalorder %s336, 14
        %s338 = scalar_select %p337, %s336, 14
        %s339 = smul.u32 128, %s338
        %p340 = scmp.lt.s32.totalorder %s335, 24
        %s341 = scalar_select %p340, %s335, 24
        %s342 = smul.addr %s341, 8
        %s343 = scalar_lea.vmem %s0, %s342
        %s344 = smul.u32 14, %s20
        %s345 = ssub.s32 25, %s344
        %p346 = scmp.lt.s32.totalorder %s345, 14
        %s347 = scalar_select %p346, %s345, 14
        %s348 = smul.u32 128, %s347
        %s349 = smul.u32 14, %s20
        %s350 = ssub.s32 25, %s349
        %p351 = scmp.lt.s32.totalorder %s350, 14
        %s352 = scalar_select %p351, %s350, 14
        %s353 = smul.u32 128, %s352
        %v355 = vld [vmem:[%s343] sm:$0xff]
        %v356 = vld [vmem:[%s343 + $0x8] sm:$0xff]
        %v357 = vld [vmem:[%s343 + $0x10] sm:$0xff]
        %v358 = vld [vmem:[%s343 + $0x18] sm:$0xff]
        %v359 = vld [vmem:[%s343 + $0x20] sm:$0xff]
        %v360 = vld [vmem:[%s343 + $0x28] sm:$0xff]
        %v361 = vld [vmem:[%s343 + $0x30] sm:$0xff]
        %v362 = vld [vmem:[%s343 + $0x38] sm:$0xff]
        %v363 = vld [vmem:[%s343 + $0x40] sm:$0xff]
        %v364 = vld [vmem:[%s343 + $0x48] sm:$0xff]
        %v365 = vld [vmem:[%s343 + $0x50] sm:$0xff]
        %v366 = vld [vmem:[%s343 + $0x58] sm:$0xff]
        %v367 = vld [vmem:[%s343 + $0x60] sm:$0xff]
        %v368 = vld [vmem:[%s343 + $0x68] sm:$0xff]
        %v369 = vpack.c.bf16 %v356, %v355
        %v370 = vpack.c.bf16 %v358, %v357
        %v371 = vpack.c.bf16 %v360, %v359
        %v372 = vpack.c.bf16 %v362, %v361
        %v373 = vpack.c.bf16 %v364, %v363
        %v374 = vpack.c.bf16 %v366, %v365
        %v375 = vpack.c.bf16 %v368, %v367
        %v376 = vld [vmem:[%s1] sm:$0xf]
        %v377 = vld [vmem:[%s1 + $0x4] sm:$0xf]
        %v378 = vld [vmem:[%s1 + $0x8] sm:$0xf]
        %v379 = vld [vmem:[%s1 + $0xc] sm:$0xf]
        %v380 = vld [vmem:[%s2] sm:$0x1]
        %v382 = vlaneseq
        %v383 = vshrl.u32 %v382, 7
        %v384 = vsub.s32 0, %v383
        %v385 = vrot.slane %v380, %v384
        %v391 = vunpack.c.l.b16 %v376
        %v392 = vunpack.c.l.b16 %v377
        %v393 = vunpack.c.l.b16 %v378
        %v394 = vunpack.c.l.b16 %v379
        %v395 = vpack.c.b16 %v392, %v391
        %v396 = vpack.c.b16 %v394, %v393
        %vm399 = vcmask 261120
        %v401 = vsel %vm399, %v369, 0
        %v404 = vsel %vm399, %v370, 0
        %v407 = vsel %vm399, %v371, 0
        %v410 = vsel %vm399, %v372, 0
        %v413 = vsel %vm399, %v373, 0
        %v416 = vsel %vm399, %v374, 0
        %v419 = vsel %vm399, %v375, 0
        %421 = vmatprep.subr.bf16.mxu0 0
        %422 = vmatpush1.bf16.msra.mxu0 %v395
        %423 = vmatprep.subr.bf16.mxu0 0
        %424 = vmatpush1.bf16.msra.mxu0 %v396
        %425 = vmatprep.subr.bf16.mxu0 0
        %426 = vmatpush1.bf16.msra.mxu0 0
        %427 = vmatprep.subr.bf16.mxu0 0
        %428 = vmatpush1.bf16.msra.mxu0 0
        %429 = vmatprep.subr.bf16.mxu0 0
        %430 = vmatpush1.bf16.msra.mxu0 0
        %431 = vmatprep.subr.bf16.mxu0 0
        %432 = vmatpush1.bf16.msra.mxu0 0
        %433 = vmatprep.subr.bf16.mxu0 0
        %434 = vmatpush1.bf16.msra.mxu0 0
        %435 = vmatprep.subr.bf16.mxu0 0
        %436 = vmatpush1.bf16.msra.mxu0 0
        %437 = vmatprep.subr.bf16.mxu0 0
        %438 = vmatpush1.bf16.msra.mxu0 0
        %439 = vmatprep.subr.bf16.mxu0 0
        %440 = vmatpush1.bf16.msra.mxu0 0
        %441 = vmatprep.subr.bf16.mxu0 0
        %442 = vmatpush1.bf16.msra.mxu0 0
        %443 = vmatprep.subr.bf16.mxu0 0
        %444 = vmatpush1.bf16.msra.mxu0 0
        %445 = vmatprep.subr.bf16.mxu0 0
        %446 = vmatpush1.bf16.msra.mxu0 0
        %447 = vmatprep.subr.bf16.mxu0 0
        %448 = vmatpush1.bf16.msra.mxu0 0
        %449 = vmatprep.subr.bf16.mxu0 0
        %450 = vmatpush1.bf16.msra.mxu0 0
        %451 = vmatprep.subr.bf16.mxu0 0
        %452 = vmatpush1.bf16.msra.mxu0 0
        %453 = vmatprep.mubr.bf16.mxu0 0
        %454 = vmatmul.mubr.bf16.gmra.mrb[0].mxu0 %v401
        %v455 = vpop.f32.mrb[0].mxu0
        %v456 = vadd.f32 %v385, %v455
        %v457 = vpop.f32.mrb[0].mxu0
        %v458 = vpop.f32.mrb[0].mxu0
        %v459 = vadd.f32 %v385, %v458
        %v460 = vpop.f32.mrb[0].mxu0
        %461 = vmatprep.mubr.bf16.mxu0 0
        %462 = vmatmul.mubr.bf16.gmra.mrb[0].mxu0 %v404
        %v463 = vpop.f32.mrb[0].mxu0
        %v464 = vadd.f32 %v385, %v463
        %v465 = vpop.f32.mrb[0].mxu0
        %v466 = vpop.f32.mrb[0].mxu0
        %v467 = vadd.f32 %v385, %v466
        %v468 = vpop.f32.mrb[0].mxu0
        %469 = vmatprep.mubr.bf16.mxu0 0
        %470 = vmatmul.mubr.bf16.gmra.mrb[0].mxu0 %v407
        %v471 = vpop.f32.mrb[0].mxu0
        %v472 = vadd.f32 %v385, %v471
        %v473 = vpop.f32.mrb[0].mxu0
        %v474 = vpop.f32.mrb[0].mxu0
        %v475 = vadd.f32 %v385, %v474
        %v476 = vpop.f32.mrb[0].mxu0
        %477 = vmatprep.mubr.bf16.mxu0 0
        %478 = vmatmul.mubr.bf16.gmra.mrb[0].mxu0 %v410
        %v479 = vpop.f32.mrb[0].mxu0
        %v480 = vadd.f32 %v385, %v479
        %v481 = vpop.f32.mrb[0].mxu0
        %v482 = vpop.f32.mrb[0].mxu0
        %v483 = vadd.f32 %v385, %v482
        %v484 = vpop.f32.mrb[0].mxu0
        %485 = vmatprep.mubr.bf16.mxu0 0
        %486 = vmatmul.mubr.bf16.gmra.mrb[0].mxu0 %v413
        %v487 = vpop.f32.mrb[0].mxu0
        %v488 = vadd.f32 %v385, %v487
        %v489 = vpop.f32.mrb[0].mxu0
        %v490 = vpop.f32.mrb[0].mxu0
        %v491 = vadd.f32 %v385, %v490
        %v492 = vpop.f32.mrb[0].mxu0
        %493 = vmatprep.mubr.bf16.mxu0 0
        %494 = vmatmul.mubr.bf16.gmra.mrb[0].mxu0 %v416
        %v495 = vpop.f32.mrb[0].mxu0
        %v496 = vadd.f32 %v385, %v495
        %v497 = vpop.f32.mrb[0].mxu0
        %v498 = vpop.f32.mrb[0].mxu0
        %v499 = vadd.f32 %v385, %v498
        %v500 = vpop.f32.mrb[0].mxu0
        %501 = vmatprep.mubr.bf16.mxu0 0
        %502 = vmatmul.mubr.bf16.gmra.mrb[0].mxu0 %v419
        %v503 = vpop.f32.mrb[0].mxu0
        %v504 = vadd.f32 %v385, %v503
        %v505 = vpop.f32.mrb[0].mxu0
        %v506 = vpop.f32.mrb[0].mxu0
        %v507 = vadd.f32 %v385, %v506
        %v508 = vpop.f32.mrb[0].mxu0
        %509 = vdwg.mxu0
        %v510 = vmax.f32 %v456, 0.0
        %v511 = vmax.f32 %v459, 0.0
        %v512 = vmax.f32 %v464, 0.0
        %v513 = vmax.f32 %v467, 0.0
        %v514 = vmax.f32 %v472, 0.0
        %v515 = vmax.f32 %v475, 0.0
        %v516 = vmax.f32 %v480, 0.0
        %v517 = vmax.f32 %v483, 0.0
        %v518 = vmax.f32 %v488, 0.0
        %v519 = vmax.f32 %v491, 0.0
        %v520 = vmax.f32 %v496, 0.0
        %v521 = vmax.f32 %v499, 0.0
        %v522 = vmax.f32 %v504, 0.0
        %v523 = vmax.f32 %v507, 0.0
        %v524 = vpack.c.bf16 %v511, %v510
        %v525 = vpack.c.bf16 %v513, %v512
        %v526 = vpack.c.bf16 %v515, %v514
        %v527 = vpack.c.bf16 %v517, %v516
        %v528 = vpack.c.bf16 %v519, %v518
        %v529 = vpack.c.bf16 %v521, %v520
        %v530 = vpack.c.bf16 %v523, %v522
        %v531 = vld [vmem:[%s3] sm:$0xf]
        %v532 = vld [vmem:[%s3 + $0x4] sm:$0xf]
        %v533 = vld [vmem:[%s3 + $0x8] sm:$0xf]
        %v534 = vld [vmem:[%s3 + $0xc] sm:$0xf]
        %v535 = vld [vmem:[%s3 + $0x10] sm:$0xf]
        %v536 = vld [vmem:[%s3 + $0x14] sm:$0xf]
        %v537 = vld [vmem:[%s3 + $0x18] sm:$0xf]
        %v538 = vld [vmem:[%s3 + $0x1c] sm:$0xf]
        %v539 = vld [vmem:[%s3 + $0x20] sm:$0xf]
        %v540 = vld [vmem:[%s3 + $0x24] sm:$0xf]
        %v541 = vld [vmem:[%s3 + $0x28] sm:$0xf]
        %v542 = vld [vmem:[%s3 + $0x2c] sm:$0xf]
        %v543 = vld [vmem:[%s3 + $0x30] sm:$0xf]
        %v544 = vld [vmem:[%s3 + $0x34] sm:$0xf]
        %v545 = vld [vmem:[%s3 + $0x38] sm:$0xf]
        %v546 = vld [vmem:[%s3 + $0x3c] sm:$0xf]
        %v547 = vld [vmem:[%s4] sm:$0x1]
        %v549 = vlaneseq
        %v550 = vshrl.u32 %v549, 7
        %v551 = vsub.s32 0, %v550
        %v552 = vrot.slane %v547, %v551
        %v570 = vunpack.c.l.b16 %v531
        %v571 = vunpack.c.l.b16 %v532
        %v572 = vunpack.c.l.b16 %v533
        %v573 = vunpack.c.l.b16 %v534
        %v574 = vunpack.c.l.b16 %v535
        %v575 = vunpack.c.l.b16 %v536
        %v576 = vunpack.c.l.b16 %v537
        %v577 = vunpack.c.l.b16 %v538
        %v578 = vunpack.c.l.b16 %v539
        %v579 = vunpack.c.l.b16 %v540
        %v580 = vunpack.c.l.b16 %v541
        %v581 = vunpack.c.l.b16 %v542
        %v582 = vunpack.c.l.b16 %v543
        %v583 = vunpack.c.l.b16 %v544
        %v584 = vunpack.c.l.b16 %v545
        %v585 = vunpack.c.l.b16 %v546
        %v586 = vpack.c.b16 %v571, %v570
        %v587 = vpack.c.b16 %v573, %v572
        %v588 = vpack.c.b16 %v575, %v574
        %v589 = vpack.c.b16 %v577, %v576
        %v590 = vpack.c.b16 %v579, %v578
        %v591 = vpack.c.b16 %v581, %v580
        %v592 = vpack.c.b16 %v583, %v582
        %v593 = vpack.c.b16 %v585, %v584
        %602 = vmatprep.subr.bf16.mxu0 0
        %603 = vmatpush1.bf16.msra.mxu0 %v586
        %604 = vmatprep.subr.bf16.mxu0 0
        %605 = vmatpush1.bf16.msra.mxu0 %v587
        %606 = vmatprep.subr.bf16.mxu0 0
        %607 = vmatpush1.bf16.msra.mxu0 %v588
        %608 = vmatprep.subr.bf16.mxu0 0
        %609 = vmatpush1.bf16.msra.mxu0 %v589
        %610 = vmatprep.subr.bf16.mxu0 0
        %611 = vmatpush1.bf16.msra.mxu0 %v590
        %612 = vmatprep.subr.bf16.mxu0 0
        %613 = vmatpush1.bf16.msra.mxu0 %v591
        %614 = vmatprep.subr.bf16.mxu0 0
        %615 = vmatpush1.bf16.msra.mxu0 %v592
        %616 = vmatprep.subr.bf16.mxu0 0
        %617 = vmatpush1.bf16.msra.mxu0 %v593
        %618 = vmatprep.subr.bf16.mxu0 0
        %619 = vmatpush1.bf16.msra.mxu0 0
        %620 = vmatprep.subr.bf16.mxu0 0
        %621 = vmatpush1.bf16.msra.mxu0 0
        %622 = vmatprep.subr.bf16.mxu0 0
        %623 = vmatpush1.bf16.msra.mxu0 0
        %624 = vmatprep.subr.bf16.mxu0 0
        %625 = vmatpush1.bf16.msra.mxu0 0
        %626 = vmatprep.subr.bf16.mxu0 0
        %627 = vmatpush1.bf16.msra.mxu0 0
        %628 = vmatprep.subr.bf16.mxu0 0
        %629 = vmatpush1.bf16.msra.mxu0 0
        %630 = vmatprep.subr.bf16.mxu0 0
        %631 = vmatpush1.bf16.msra.mxu0 0
        %632 = vmatprep.subr.bf16.mxu0 0
        %633 = vmatpush1.bf16.msra.mxu0 0
        %634 = vmatprep.mubr.bf16.mxu0 0
        %635 = vmatmul.mubr.bf16.gmra.mrb[0].mxu0 %v524
        %v636 = vpop.f32.mrb[0].mxu0
        %v637 = vadd.f32 %v552, %v636
        %v638 = vpop.f32.mrb[0].mxu0
        %v639 = vpop.f32.mrb[0].mxu0
        %v640 = vadd.f32 %v552, %v639
        %v641 = vpop.f32.mrb[0].mxu0
        %642 = vmatprep.mubr.bf16.mxu0 0
        %643 = vmatmul.mubr.bf16.gmra.mrb[0].mxu0 %v525
        %v644 = vpop.f32.mrb[0].mxu0
        %v645 = vadd.f32 %v552, %v644
        %v646 = vpop.f32.mrb[0].mxu0
        %v647 = vpop.f32.mrb[0].mxu0
        %v648 = vadd.f32 %v552, %v647
        %v649 = vpop.f32.mrb[0].mxu0
        %650 = vmatprep.mubr.bf16.mxu0 0
        %651 = vmatmul.mubr.bf16.gmra.mrb[0].mxu0 %v526
        %v652 = vpop.f32.mrb[0].mxu0
        %v653 = vadd.f32 %v552, %v652
        %v654 = vpop.f32.mrb[0].mxu0
        %v655 = vpop.f32.mrb[0].mxu0
        %v656 = vadd.f32 %v552, %v655
        %v657 = vpop.f32.mrb[0].mxu0
        %658 = vmatprep.mubr.bf16.mxu0 0
        %659 = vmatmul.mubr.bf16.gmra.mrb[0].mxu0 %v527
        %v660 = vpop.f32.mrb[0].mxu0
        %v661 = vadd.f32 %v552, %v660
        %v662 = vpop.f32.mrb[0].mxu0
        %v663 = vpop.f32.mrb[0].mxu0
        %v664 = vadd.f32 %v552, %v663
        %v665 = vpop.f32.mrb[0].mxu0
        %666 = vmatprep.mubr.bf16.mxu0 0
        %667 = vmatmul.mubr.bf16.gmra.mrb[0].mxu0 %v528
        %v668 = vpop.f32.mrb[0].mxu0
        %v669 = vadd.f32 %v552, %v668
        %v670 = vpop.f32.mrb[0].mxu0
        %v671 = vpop.f32.mrb[0].mxu0
        %v672 = vadd.f32 %v552, %v671
        %v673 = vpop.f32.mrb[0].mxu0
        %674 = vmatprep.mubr.bf16.mxu0 0
        %675 = vmatmul.mubr.bf16.gmra.mrb[0].mxu0 %v529
        %v676 = vpop.f32.mrb[0].mxu0
        %v677 = vadd.f32 %v552, %v676
        %v678 = vpop.f32.mrb[0].mxu0
        %v679 = vpop.f32.mrb[0].mxu0
        %v680 = vadd.f32 %v552, %v679
        %v681 = vpop.f32.mrb[0].mxu0
        %682 = vmatprep.mubr.bf16.mxu0 0
        %683 = vmatmul.mubr.bf16.gmra.mrb[0].mxu0 %v530
        %v684 = vpop.f32.mrb[0].mxu0
        %v685 = vadd.f32 %v552, %v684
        %v686 = vpop.f32.mrb[0].mxu0
        %v687 = vpop.f32.mrb[0].mxu0
        %v688 = vadd.f32 %v552, %v687
        %v689 = vpop.f32.mrb[0].mxu0
        %690 = vdwg.mxu0
        %v691 = vmax.f32 %v637, 0.0
        %v692 = vmax.f32 %v640, 0.0
        %v693 = vmax.f32 %v645, 0.0
        %v694 = vmax.f32 %v648, 0.0
        %v695 = vmax.f32 %v653, 0.0
        %v696 = vmax.f32 %v656, 0.0
        %v697 = vmax.f32 %v661, 0.0
        %v698 = vmax.f32 %v664, 0.0
        %v699 = vmax.f32 %v669, 0.0
        %v700 = vmax.f32 %v672, 0.0
        %v701 = vmax.f32 %v677, 0.0
        %v702 = vmax.f32 %v680, 0.0
        %v703 = vmax.f32 %v685, 0.0
        %v704 = vmax.f32 %v688, 0.0
        %v705 = vpack.c.bf16 %v692, %v691
        %v706 = vpack.c.bf16 %v694, %v693
        %v707 = vpack.c.bf16 %v696, %v695
        %v708 = vpack.c.bf16 %v698, %v697
        %v709 = vpack.c.bf16 %v700, %v699
        %v710 = vpack.c.bf16 %v702, %v701
        %v711 = vpack.c.bf16 %v704, %v703
        %v712 = vld [vmem:[%s5] sm:$0xf]
        %v713 = vld [vmem:[%s5 + $0x4] sm:$0xf]
        %v714 = vld [vmem:[%s5 + $0x8] sm:$0xf]
        %v715 = vld [vmem:[%s5 + $0xc] sm:$0xf]
        %v716 = vld [vmem:[%s5 + $0x10] sm:$0xf]
        %v717 = vld [vmem:[%s5 + $0x14] sm:$0xf]
        %v718 = vld [vmem:[%s5 + $0x18] sm:$0xf]
        %v719 = vld [vmem:[%s5 + $0x1c] sm:$0xf]
        %v720 = vld [vmem:[%s5 + $0x20] sm:$0xf]
        %v721 = vld [vmem:[%s5 + $0x24] sm:$0xf]
        %v722 = vld [vmem:[%s5 + $0x28] sm:$0xf]
        %v723 = vld [vmem:[%s5 + $0x2c] sm:$0xf]
        %v724 = vld [vmem:[%s5 + $0x30] sm:$0xf]
        %v725 = vld [vmem:[%s5 + $0x34] sm:$0xf]
        %v726 = vld [vmem:[%s5 + $0x38] sm:$0xf]
        %v727 = vld [vmem:[%s5 + $0x3c] sm:$0xf]
        %v728 = vld [vmem:[%s6] sm:$0x1]
        %v730 = vlaneseq
        %v731 = vshrl.u32 %v730, 7
        %v732 = vsub.s32 0, %v731
        %v733 = vrot.slane %v728, %v732
        %v751 = vunpack.c.l.b16 %v712
        %v752 = vunpack.c.l.b16 %v713
        %v753 = vunpack.c.l.b16 %v714
        %v754 = vunpack.c.l.b16 %v715
        %v755 = vunpack.c.l.b16 %v716
        %v756 = vunpack.c.l.b16 %v717
        %v757 = vunpack.c.l.b16 %v718
        %v758 = vunpack.c.l.b16 %v719
        %v759 = vunpack.c.l.b16 %v720
        %v760 = vunpack.c.l.b16 %v721
        %v761 = vunpack.c.l.b16 %v722
        %v762 = vunpack.c.l.b16 %v723
        %v763 = vunpack.c.l.b16 %v724
        %v764 = vunpack.c.l.b16 %v725
        %v765 = vunpack.c.l.b16 %v726
        %v766 = vunpack.c.l.b16 %v727
        %v767 = vpack.c.b16 %v752, %v751
        %v768 = vpack.c.b16 %v754, %v753
        %v769 = vpack.c.b16 %v756, %v755
        %v770 = vpack.c.b16 %v758, %v757
        %v771 = vpack.c.b16 %v760, %v759
        %v772 = vpack.c.b16 %v762, %v761
        %v773 = vpack.c.b16 %v764, %v763
        %v774 = vpack.c.b16 %v766, %v765
        %783 = vmatprep.subr.bf16.mxu0 0
        %784 = vmatpush1.bf16.msra.mxu0 %v767
        %785 = vmatprep.subr.bf16.mxu0 0
        %786 = vmatpush1.bf16.msra.mxu0 %v768
        %787 = vmatprep.subr.bf16.mxu0 0
        %788 = vmatpush1.bf16.msra.mxu0 %v769
        %789 = vmatprep.subr.bf16.mxu0 0
        %790 = vmatpush1.bf16.msra.mxu0 %v770
        %791 = vmatprep.subr.bf16.mxu0 0
        %792 = vmatpush1.bf16.msra.mxu0 %v771
        %793 = vmatprep.subr.bf16.mxu0 0
        %794 = vmatpush1.bf16.msra.mxu0 %v772
        %795 = vmatprep.subr.bf16.mxu0 0
        %796 = vmatpush1.bf16.msra.mxu0 %v773
        %797 = vmatprep.subr.bf16.mxu0 0
        %798 = vmatpush1.bf16.msra.mxu0 %v774
        %799 = vmatprep.subr.bf16.mxu0 0
        %800 = vmatpush1.bf16.msra.mxu0 0
        %801 = vmatprep.subr.bf16.mxu0 0
        %802 = vmatpush1.bf16.msra.mxu0 0
        %803 = vmatprep.subr.bf16.mxu0 0
        %804 = vmatpush1.bf16.msra.mxu0 0
        %805 = vmatprep.subr.bf16.mxu0 0
        %806 = vmatpush1.bf16.msra.mxu0 0
        %807 = vmatprep.subr.bf16.mxu0 0
        %808 = vmatpush1.bf16.msra.mxu0 0
        %809 = vmatprep.subr.bf16.mxu0 0
        %810 = vmatpush1.bf16.msra.mxu0 0
        %811 = vmatprep.subr.bf16.mxu0 0
        %812 = vmatpush1.bf16.msra.mxu0 0
        %813 = vmatprep.subr.bf16.mxu0 0
        %814 = vmatpush1.bf16.msra.mxu0 0
        %815 = vmatprep.mubr.bf16.mxu0 0
        %816 = vmatmul.mubr.bf16.gmra.mrb[0].mxu0 %v705
        %v817 = vpop.f32.mrb[0].mxu0
        %v818 = vadd.f32 %v733, %v817
        %v819 = vpop.f32.mrb[0].mxu0
        %v820 = vpop.f32.mrb[0].mxu0
        %v821 = vadd.f32 %v733, %v820
        %v822 = vpop.f32.mrb[0].mxu0
        %823 = vmatprep.mubr.bf16.mxu0 0
        %824 = vmatmul.mubr.bf16.gmra.mrb[0].mxu0 %v706
        %v825 = vpop.f32.mrb[0].mxu0
        %v826 = vadd.f32 %v733, %v825
        %v827 = vpop.f32.mrb[0].mxu0
        %v828 = vpop.f32.mrb[0].mxu0
        %v829 = vadd.f32 %v733, %v828
        %v830 = vpop.f32.mrb[0].mxu0
        %831 = vmatprep.mubr.bf16.mxu0 0
        %832 = vmatmul.mubr.bf16.gmra.mrb[0].mxu0 %v707
        %v833 = vpop.f32.mrb[0].mxu0
        %v834 = vadd.f32 %v733, %v833
        %v835 = vpop.f32.mrb[0].mxu0
        %v836 = vpop.f32.mrb[0].mxu0
        %v837 = vadd.f32 %v733, %v836
        %v838 = vpop.f32.mrb[0].mxu0
        %839 = vmatprep.mubr.bf16.mxu0 0
        %840 = vmatmul.mubr.bf16.gmra.mrb[0].mxu0 %v708
        %v841 = vpop.f32.mrb[0].mxu0
        %v842 = vadd.f32 %v733, %v841
        %v843 = vpop.f32.mrb[0].mxu0
        %v844 = vpop.f32.mrb[0].mxu0
        %v845 = vadd.f32 %v733, %v844
        %v846 = vpop.f32.mrb[0].mxu0
        %847 = vmatprep.mubr.bf16.mxu0 0
        %848 = vmatmul.mubr.bf16.gmra.mrb[0].mxu0 %v709
        %v849 = vpop.f32.mrb[0].mxu0
        %v850 = vadd.f32 %v733, %v849
        %v851 = vpop.f32.mrb[0].mxu0
        %v852 = vpop.f32.mrb[0].mxu0
        %v853 = vadd.f32 %v733, %v852
        %v854 = vpop.f32.mrb[0].mxu0
        %855 = vmatprep.mubr.bf16.mxu0 0
        %856 = vmatmul.mubr.bf16.gmra.mrb[0].mxu0 %v710
        %v857 = vpop.f32.mrb[0].mxu0
        %v858 = vadd.f32 %v733, %v857
        %v859 = vpop.f32.mrb[0].mxu0
        %v860 = vpop.f32.mrb[0].mxu0
        %v861 = vadd.f32 %v733, %v860
        %v862 = vpop.f32.mrb[0].mxu0
        %863 = vmatprep.mubr.bf16.mxu0 0
        %864 = vmatmul.mubr.bf16.gmra.mrb[0].mxu0 %v711
        %v865 = vpop.f32.mrb[0].mxu0
        %v866 = vadd.f32 %v733, %v865
        %v867 = vpop.f32.mrb[0].mxu0
        %v868 = vpop.f32.mrb[0].mxu0
        %v869 = vadd.f32 %v733, %v868
        %v870 = vpop.f32.mrb[0].mxu0
        %871 = vdwg.mxu0
        %v872 = vmax.f32 %v818, 0.0
        %v873 = vmax.f32 %v821, 0.0
        %v874 = vmax.f32 %v826, 0.0
        %v875 = vmax.f32 %v829, 0.0
        %v876 = vmax.f32 %v834, 0.0
        %v877 = vmax.f32 %v837, 0.0
        %v878 = vmax.f32 %v842, 0.0
        %v879 = vmax.f32 %v845, 0.0
        %v880 = vmax.f32 %v850, 0.0
        %v881 = vmax.f32 %v853, 0.0
        %v882 = vmax.f32 %v858, 0.0
        %v883 = vmax.f32 %v861, 0.0
        %v884 = vmax.f32 %v866, 0.0
        %v885 = vmax.f32 %v869, 0.0
        %v886 = vpack.c.bf16 %v873, %v872
        %v887 = vpack.c.bf16 %v875, %v874
        %v888 = vpack.c.bf16 %v877, %v876
        %v889 = vpack.c.bf16 %v879, %v878
        %v890 = vpack.c.bf16 %v881, %v880
        %v891 = vpack.c.bf16 %v883, %v882
        %v892 = vpack.c.bf16 %v885, %v884
        %v893 = vld [vmem:[%s7] sm:$0xf]
        %v894 = vld [vmem:[%s7 + $0x4] sm:$0xf]
        %v895 = vld [vmem:[%s7 + $0x8] sm:$0xf]
        %v896 = vld [vmem:[%s7 + $0xc] sm:$0xf]
        %v897 = vld [vmem:[%s7 + $0x10] sm:$0xf]
        %v898 = vld [vmem:[%s7 + $0x14] sm:$0xf]
        %v899 = vld [vmem:[%s7 + $0x18] sm:$0xf]
        %v900 = vld [vmem:[%s7 + $0x1c] sm:$0xf]
        %v901 = vld [vmem:[%s7 + $0x20] sm:$0xf]
        %v902 = vld [vmem:[%s7 + $0x24] sm:$0xf]
        %v903 = vld [vmem:[%s7 + $0x28] sm:$0xf]
        %v904 = vld [vmem:[%s7 + $0x2c] sm:$0xf]
        %v905 = vld [vmem:[%s7 + $0x30] sm:$0xf]
        %v906 = vld [vmem:[%s7 + $0x34] sm:$0xf]
        %v907 = vld [vmem:[%s7 + $0x38] sm:$0xf]
        %v908 = vld [vmem:[%s7 + $0x3c] sm:$0xf]
        %v909 = vld [vmem:[%s8] sm:$0x1]
        %v911 = vlaneseq
        %v912 = vshrl.u32 %v911, 7
        %v913 = vsub.s32 0, %v912
        %v914 = vrot.slane %v909, %v913
        %v932 = vunpack.c.l.b16 %v893
        %v933 = vunpack.c.l.b16 %v894
        %v934 = vunpack.c.l.b16 %v895
        %v935 = vunpack.c.l.b16 %v896
        %v936 = vunpack.c.l.b16 %v897
        %v937 = vunpack.c.l.b16 %v898
        %v938 = vunpack.c.l.b16 %v899
        %v939 = vunpack.c.l.b16 %v900
        %v940 = vunpack.c.l.b16 %v901
        %v941 = vunpack.c.l.b16 %v902
        %v942 = vunpack.c.l.b16 %v903
        %v943 = vunpack.c.l.b16 %v904
        %v944 = vunpack.c.l.b16 %v905
        %v945 = vunpack.c.l.b16 %v906
        %v946 = vunpack.c.l.b16 %v907
        %v947 = vunpack.c.l.b16 %v908
        %v948 = vpack.c.b16 %v933, %v932
        %v949 = vpack.c.b16 %v935, %v934
        %v950 = vpack.c.b16 %v937, %v936
        %v951 = vpack.c.b16 %v939, %v938
        %v952 = vpack.c.b16 %v941, %v940
        %v953 = vpack.c.b16 %v943, %v942
        %v954 = vpack.c.b16 %v945, %v944
        %v955 = vpack.c.b16 %v947, %v946
        %964 = vmatprep.subr.bf16.mxu0 0
        %965 = vmatpush1.bf16.msra.mxu0 %v948
        %966 = vmatprep.subr.bf16.mxu0 0
        %967 = vmatpush1.bf16.msra.mxu0 %v949
        %968 = vmatprep.subr.bf16.mxu0 0
        %969 = vmatpush1.bf16.msra.mxu0 %v950
        %970 = vmatprep.subr.bf16.mxu0 0
        %971 = vmatpush1.bf16.msra.mxu0 %v951
        %972 = vmatprep.subr.bf16.mxu0 0
        %973 = vmatpush1.bf16.msra.mxu0 %v952
        %974 = vmatprep.subr.bf16.mxu0 0
        %975 = vmatpush1.bf16.msra.mxu0 %v953
        %976 = vmatprep.subr.bf16.mxu0 0
        %977 = vmatpush1.bf16.msra.mxu0 %v954
        %978 = vmatprep.subr.bf16.mxu0 0
        %979 = vmatpush1.bf16.msra.mxu0 %v955
        %980 = vmatprep.subr.bf16.mxu0 0
        %981 = vmatpush1.bf16.msra.mxu0 0
        %982 = vmatprep.subr.bf16.mxu0 0
        %983 = vmatpush1.bf16.msra.mxu0 0
        %984 = vmatprep.subr.bf16.mxu0 0
        %985 = vmatpush1.bf16.msra.mxu0 0
        %986 = vmatprep.subr.bf16.mxu0 0
        %987 = vmatpush1.bf16.msra.mxu0 0
        %988 = vmatprep.subr.bf16.mxu0 0
        %989 = vmatpush1.bf16.msra.mxu0 0
        %990 = vmatprep.subr.bf16.mxu0 0
        %991 = vmatpush1.bf16.msra.mxu0 0
        %992 = vmatprep.subr.bf16.mxu0 0
        %993 = vmatpush1.bf16.msra.mxu0 0
        %994 = vmatprep.subr.bf16.mxu0 0
        %995 = vmatpush1.bf16.msra.mxu0 0
        %996 = vmatprep.mubr.bf16.mxu0 0
        %997 = vmatmul.mubr.bf16.gmra.mrb[0].mxu0 %v886
        %v998 = vpop.f32.mrb[0].mxu0
        %v999 = vadd.f32 %v914, %v998
        %v1000 = vpop.f32.mrb[0].mxu0
        %v1001 = vpop.f32.mrb[0].mxu0
        %v1002 = vadd.f32 %v914, %v1001
        %v1003 = vpop.f32.mrb[0].mxu0
        %1004 = vmatprep.mubr.bf16.mxu0 0
        %1005 = vmatmul.mubr.bf16.gmra.mrb[0].mxu0 %v887
        %v1006 = vpop.f32.mrb[0].mxu0
        %v1007 = vadd.f32 %v914, %v1006
        %v1008 = vpop.f32.mrb[0].mxu0
        %v1009 = vpop.f32.mrb[0].mxu0
        %v1010 = vadd.f32 %v914, %v1009
        %v1011 = vpop.f32.mrb[0].mxu0
        %1012 = vmatprep.mubr.bf16.mxu0 0
        %1013 = vmatmul.mubr.bf16.gmra.mrb[0].mxu0 %v888
        %v1014 = vpop.f32.mrb[0].mxu0
        %v1015 = vadd.f32 %v914, %v1014
        %v1016 = vpop.f32.mrb[0].mxu0
        %v1017 = vpop.f32.mrb[0].mxu0
        %v1018 = vadd.f32 %v914, %v1017
        %v1019 = vpop.f32.mrb[0].mxu0
        %1020 = vmatprep.mubr.bf16.mxu0 0
        %1021 = vmatmul.mubr.bf16.gmra.mrb[0].mxu0 %v889
        %v1022 = vpop.f32.mrb[0].mxu0
        %v1023 = vadd.f32 %v914, %v1022
        %v1024 = vpop.f32.mrb[0].mxu0
        %v1025 = vpop.f32.mrb[0].mxu0
        %v1026 = vadd.f32 %v914, %v1025
        %v1027 = vpop.f32.mrb[0].mxu0
        %1028 = vmatprep.mubr.bf16.mxu0 0
        %1029 = vmatmul.mubr.bf16.gmra.mrb[0].mxu0 %v890
        %v1030 = vpop.f32.mrb[0].mxu0
        %v1031 = vadd.f32 %v914, %v1030
        %v1032 = vpop.f32.mrb[0].mxu0
        %v1033 = vpop.f32.mrb[0].mxu0
        %v1034 = vadd.f32 %v914, %v1033
        %v1035 = vpop.f32.mrb[0].mxu0
        %1036 = vmatprep.mubr.bf16.mxu0 0
        %1037 = vmatmul.mubr.bf16.gmra.mrb[0].mxu0 %v891
        %v1038 = vpop.f32.mrb[0].mxu0
        %v1039 = vadd.f32 %v914, %v1038
        %v1040 = vpop.f32.mrb[0].mxu0
        %v1041 = vpop.f32.mrb[0].mxu0
        %v1042 = vadd.f32 %v914, %v1041
        %v1043 = vpop.f32.mrb[0].mxu0
        %1044 = vmatprep.mubr.bf16.mxu0 0
        %1045 = vmatmul.mubr.bf16.gmra.mrb[0].mxu0 %v892
        %v1046 = vpop.f32.mrb[0].mxu0
        %v1047 = vadd.f32 %v914, %v1046
        %v1048 = vpop.f32.mrb[0].mxu0
        %v1049 = vpop.f32.mrb[0].mxu0
        %v1050 = vadd.f32 %v914, %v1049
        %v1051 = vpop.f32.mrb[0].mxu0
        %1052 = vdwg.mxu0
        %v1053 = vsub.f32 0.0, %v999
        %v1054 = vsub.f32 0.0, %v1002
        %v1055 = vsub.f32 0.0, %v1007
        %v1056 = vsub.f32 0.0, %v1010
        %v1057 = vsub.f32 0.0, %v1015
        %v1058 = vsub.f32 0.0, %v1018
        %v1059 = vsub.f32 0.0, %v1023
        %v1060 = vsub.f32 0.0, %v1026
        %v1061 = vsub.f32 0.0, %v1031
        %v1062 = vsub.f32 0.0, %v1034
        %v1063 = vsub.f32 0.0, %v1039
        %v1064 = vsub.f32 0.0, %v1042
        %v1065 = vsub.f32 0.0, %v1047
        %v1066 = vsub.f32 0.0, %v1050
        %v1067 = vmul.f32 %v1053, 1.442695
        %v1068 = vpow.pop %v1067
        %v1069 = vmul.f32 %v1054, 1.442695
        %v1070 = vpow.pop %v1069
        %v1071 = vmul.f32 %v1055, 1.442695
        %v1072 = vpow.pop %v1071
        %v1073 = vmul.f32 %v1056, 1.442695
        %v1074 = vpow.pop %v1073
        %v1075 = vmul.f32 %v1057, 1.442695
        %v1076 = vpow.pop %v1075
        %v1077 = vmul.f32 %v1058, 1.442695
        %v1078 = vpow.pop %v1077
        %v1079 = vmul.f32 %v1059, 1.442695
        %v1080 = vpow.pop %v1079
        %v1081 = vmul.f32 %v1060, 1.442695
        %v1082 = vpow.pop %v1081
        %v1083 = vmul.f32 %v1061, 1.442695
        %v1084 = vpow.pop %v1083
        %v1085 = vmul.f32 %v1062, 1.442695
        %v1086 = vpow.pop %v1085
        %v1087 = vmul.f32 %v1063, 1.442695
        %v1088 = vpow.pop %v1087
        %v1089 = vmul.f32 %v1064, 1.442695
        %v1090 = vpow.pop %v1089
        %v1091 = vmul.f32 %v1065, 1.442695
        %v1092 = vpow.pop %v1091
        %v1093 = vmul.f32 %v1066, 1.442695
        %v1094 = vpow.pop %v1093
        %v1095 = vadd.f32 %v1068, 1.0
        %v1096 = vadd.f32 %v1070, 1.0
        %v1097 = vadd.f32 %v1072, 1.0
        %v1098 = vadd.f32 %v1074, 1.0
        %v1099 = vadd.f32 %v1076, 1.0
        %v1100 = vadd.f32 %v1078, 1.0
        %v1101 = vadd.f32 %v1080, 1.0
        %v1102 = vadd.f32 %v1082, 1.0
        %v1103 = vadd.f32 %v1084, 1.0
        %v1104 = vadd.f32 %v1086, 1.0
        %v1105 = vadd.f32 %v1088, 1.0
        %v1106 = vadd.f32 %v1090, 1.0
        %v1107 = vadd.f32 %v1092, 1.0
        %v1108 = vadd.f32 %v1094, 1.0
        %v1109 = vrcp.pop %v1095
        %v1110 = vrcp.pop %v1096
        %v1111 = vrcp.pop %v1097
        %v1112 = vrcp.pop %v1098
        %v1113 = vrcp.pop %v1099
        %v1114 = vrcp.pop %v1100
        %v1115 = vrcp.pop %v1101
        %v1116 = vrcp.pop %v1102
        %v1117 = vrcp.pop %v1103
        %v1118 = vrcp.pop %v1104
        %v1119 = vrcp.pop %v1105
        %v1120 = vrcp.pop %v1106
        %v1121 = vrcp.pop %v1107
        %v1122 = vrcp.pop %v1108
        %vm1123 = vcmask 64512
        %1124 = vst.msk [vmem:[%s334] sm:$0xff] %vm1123, %v1109
        %1125 = vst.msk [vmem:[%s334 + $0x8] sm:$0xff] %vm1123, %v1110
        %1126 = vst.msk [vmem:[%s334 + $0x10] sm:$0xff] %vm1123, %v1111
        %1127 = vst.msk [vmem:[%s334 + $0x18] sm:$0xff] %vm1123, %v1112
        %1128 = vst.msk [vmem:[%s334 + $0x20] sm:$0xff] %vm1123, %v1113
        %1129 = vst.msk [vmem:[%s334 + $0x28] sm:$0xff] %vm1123, %v1114
        %1130 = vst.msk [vmem:[%s334 + $0x30] sm:$0xff] %vm1123, %v1115
        %1131 = vst.msk [vmem:[%s334 + $0x38] sm:$0xff] %vm1123, %v1116
        %1132 = vst.msk [vmem:[%s334 + $0x40] sm:$0xff] %vm1123, %v1117
        %1133 = vst.msk [vmem:[%s334 + $0x48] sm:$0xff] %vm1123, %v1118
        %1134 = vst.msk [vmem:[%s334 + $0x50] sm:$0xff] %vm1123, %v1119
        %1135 = vst.msk [vmem:[%s334 + $0x58] sm:$0xff] %vm1123, %v1120
        %1136 = vst.msk [vmem:[%s334 + $0x60] sm:$0xff] %vm1123, %v1121
        %1137 = vst.msk [vmem:[%s334 + $0x68] sm:$0xff] %vm1123, %v1122
        %s1138 = sand.u32 %s222, 1
        %s1139 = sand.u32 %s222, 1
        %s1140 = smul.addr %s1139, 112
        %s1141 = scalar_lea.vmem [#allocation2], %s1140
        // Predicated region
        $region57: #{tpu_custom_call.1} parent=55 // pred_check
          %p1142 = pneg %p232
        $region58: #{tpu_custom_call.1} parent=55 // pred_check_branch
          %1144 = sbr.rel (%p1142) target = $region60
        $region59: #{tpu_custom_call.1} parent=55 // pred_region
          %s1145 = smul.u32 14, %s20
          %s1146 = ssub.s32 25, %s1145
          %p1147 = scmp.lt.s32.totalorder %s1146, 14
          %s1148 = scalar_select %p1147, %s1146, 14
          %s1149 = smul.u32 128, %s1148
          %p1150 = scmp.ne.s32.totalorder 0, %s1149
          %s1151 = smul.addr %s1145, 8
          %s1152 = scalar_lea.vmem %s9, %s1151
          // Predicated region
          $region61: #{tpu_custom_call.1} parent=59 // pred_check
            %p1153 = pneg %p1150
          $region62: #{tpu_custom_call.1} parent=59 // pred_check_branch
            %1155 = sbr.rel (%p1153) target = $region64
          $region63: #{tpu_custom_call.1} parent=59 // pred_region
            // Predicated region
            $region65: #{tpu_custom_call.1} parent=63 // pred_check
              _
            $region66: #{tpu_custom_call.1} parent=63 // pred_check_branch
              %1157 = sbr.rel (0) target = $region68
            $region67: #{tpu_custom_call.1} parent=63 // pred_region
              // Predicated region
              $region87: #{tpu_custom_call.1} parent=67 // pred_check
                _
              $region88: #{tpu_custom_call.1} parent=67 // pred_check_branch
                %1233 = sbr.rel (0) target = $region90
              $region89: #{tpu_custom_call.1} parent=67 // pred_region
                %s1234 = sdiv.u32.pop %s1148, 14
                %s1235 = srem.u32.pop %s1148, 14
                // While loop
                $region91: #{tpu_custom_call.1} parent=89 // loop_pre_header
                  _
                $region92: #{tpu_custom_call.1} parent=89 // loop_header
                  %s1237 = sphi 0, %s1239
                  %p1238 = scmp.ge.s32.totalorder %s1237, %s1234
                  %s1242 = sphi 0, %s1275
                  %s1243 = sphi %s1141, %s1278
                  %s1244 = sphi %s1152, %s1279
                $region93: #{tpu_custom_call.1} parent=89 // loop_header_branch
                  %1241 = sbr.rel (%p1238) target = $region97
                $region94: #{tpu_custom_call.1} parent=89 // loop_body
                  %v1245 = vld [vmem:[%s1243] sm:$0xff]
                  %1246 = vst [vmem:[%s1244] sm:$0xff] %v1245
                  %v1247 = vld [vmem:[%s1243 + $0x8] sm:$0xff]
                  %1248 = vst [vmem:[%s1244 + $0x8] sm:$0xff] %v1247
                  %v1249 = vld [vmem:[%s1243 + $0x10] sm:$0xff]
                  %1250 = vst [vmem:[%s1244 + $0x10] sm:$0xff] %v1249
                  %v1251 = vld [vmem:[%s1243 + $0x18] sm:$0xff]
                  %1252 = vst [vmem:[%s1244 + $0x18] sm:$0xff] %v1251
                  %v1253 = vld [vmem:[%s1243 + $0x20] sm:$0xff]
                  %1254 = vst [vmem:[%s1244 + $0x20] sm:$0xff] %v1253
                  %v1255 = vld [vmem:[%s1243 + $0x28] sm:$0xff]
                  %1256 = vst [vmem:[%s1244 + $0x28] sm:$0xff] %v1255
                  %v1257 = vld [vmem:[%s1243 + $0x30] sm:$0xff]
                  %1258 = vst [vmem:[%s1244 + $0x30] sm:$0xff] %v1257
                  %v1259 = vld [vmem:[%s1243 + $0x38] sm:$0xff]
                  %1260 = vst [vmem:[%s1244 + $0x38] sm:$0xff] %v1259
                  %v1261 = vld [vmem:[%s1243 + $0x40] sm:$0xff]
                  %1262 = vst [vmem:[%s1244 + $0x40] sm:$0xff] %v1261
                  %v1263 = vld [vmem:[%s1243 + $0x48] sm:$0xff]
                  %1264 = vst [vmem:[%s1244 + $0x48] sm:$0xff] %v1263
                  %v1265 = vld [vmem:[%s1243 + $0x50] sm:$0xff]
                  %1266 = vst [vmem:[%s1244 + $0x50] sm:$0xff] %v1265
                  %v1267 = vld [vmem:[%s1243 + $0x58] sm:$0xff]
                  %1268 = vst [vmem:[%s1244 + $0x58] sm:$0xff] %v1267
                  %v1269 = vld [vmem:[%s1243 + $0x60] sm:$0xff]
                  %1270 = vst [vmem:[%s1244 + $0x60] sm:$0xff] %v1269
                  %v1271 = vld [vmem:[%s1243 + $0x68] sm:$0xff]
                  %1272 = vst [vmem:[%s1244 + $0x68] sm:$0xff] %v1271
                  %s1273 = sadd.s32 1, %s1242
                  %p1274 = scmp.ge.s32.totalorder %s1273, %s1234
                  %s1275 = scalar_select %p1274, 0, %s1273
                  %s1276 = smul.u32 %s1275, 112
                  %s1277 = smul.u32 %s1275, 112
                  %s1278 = scalar_lea.vmem %s1141, %s1276 [#allocation2]
                  %s1279 = scalar_lea.vmem %s1152, %s1277
                $region95: #{tpu_custom_call.1} parent=89 // loop_footer
                  %s1239 = sadd.s32 %s1237, 1
                $region96: #{tpu_custom_call.1} parent=89 // loop_footer_branch
                  %1236 = sbr.rel target = $region92
                $region97: #{tpu_custom_call.1} parent=89 // loop_exit
                  _
                %s1280 = sdiv.u32.pop %s1148, 14
                %s1281 = srem.u32.pop %s1148, 14
                %s1282 = smul.u32 %s1280, 14
                %s1283 = smul.u32 8, %s1282
                %s1284 = scalar_lea.vmem %s1141, %s1283 [#allocation2]
                %s1285 = smul.u32 8, %s1282
                %s1286 = scalar_lea.vmem %s1152, %s1285
                // While loop
                $region98: #{tpu_custom_call.1} parent=89 // loop_pre_header
                  _
                $region99: #{tpu_custom_call.1} parent=89 // loop_header
                  %s1288 = sphi 0, %s1290
                  %p1289 = scmp.ge.s32.totalorder %s1288, %s1281
                  %s1293 = sphi 0, %s1300
                  %s1294 = sphi %s1284, %s1303
                  %s1295 = sphi %s1286, %s1304
                $region100: #{tpu_custom_call.1} parent=89 // loop_header_branch
                  %1292 = sbr.rel (%p1289) target = $region104
                $region101: #{tpu_custom_call.1} parent=89 // loop_body
                  %v1296 = vld [vmem:[%s1294] sm:$0xff]
                  %1297 = vst [vmem:[%s1295] sm:$0xff] %v1296
                  %s1298 = sadd.s32 1, %s1293
                  %p1299 = scmp.ge.s32.totalorder %s1298, %s1281
                  %s1300 = scalar_select %p1299, 0, %s1298
                  %s1301 = smul.u32 %s1300, 8
                  %s1302 = smul.u32 %s1300, 8
                  %s1303 = scalar_lea.vmem %s1284, %s1301 [#allocation2]
                  %s1304 = scalar_lea.vmem %s1286, %s1302
                $region102: #{tpu_custom_call.1} parent=89 // loop_footer
                  %s1290 = sadd.s32 %s1288, 1
                $region103: #{tpu_custom_call.1} parent=89 // loop_footer_branch
                  %1287 = sbr.rel target = $region99
                $region104: #{tpu_custom_call.1} parent=89 // loop_exit
                  _
              $region90: #{tpu_custom_call.1} parent=67 // pred_fallthru
                _
              // Predicated region
              $region105: #{tpu_custom_call.1} parent=67 // pred_check
                _
              $region106: #{tpu_custom_call.1} parent=67 // pred_check_branch
                %1306 = sbr.rel target = $region108
              $region107: #{tpu_custom_call.1} parent=67 // pred_region
                _
              $region108: #{tpu_custom_call.1} parent=67 // pred_fallthru
                _
            $region68: #{tpu_custom_call.1} parent=63 // pred_fallthru
              _
            // Predicated region
            $region69: #{tpu_custom_call.1} parent=63 // pred_check
              _
            $region70: #{tpu_custom_call.1} parent=63 // pred_check_branch
              %1159 = sbr.rel target = $region72
            $region71: #{tpu_custom_call.1} parent=63 // pred_region
              %s1161 = sdiv.u32.pop %s1148, 14
              %s1162 = srem.u32.pop %s1148, 14
              // While loop
              $region73: #{tpu_custom_call.1} parent=71 // loop_pre_header
                _
              $region74: #{tpu_custom_call.1} parent=71 // loop_header
                %s1164 = sphi 0, %s1166
                %p1165 = scmp.ge.s32.totalorder %s1164, %s1161
                %s1169 = sphi 0, %s1202
                %s1170 = sphi %s1141, %s1205
                %s1171 = sphi %s1152, %s1206
              $region75: #{tpu_custom_call.1} parent=71 // loop_header_branch
                %1168 = sbr.rel (%p1165) target = $region79
              $region76: #{tpu_custom_call.1} parent=71 // loop_body
                %v1172 = vld [vmem:[%s1170] sm:$0xff]
                %1173 = vst [vmem:[%s1171] sm:$0xff] %v1172
                %v1174 = vld [vmem:[%s1170 + $0x8] sm:$0xff]
                %1175 = vst [vmem:[%s1171 + $0x8] sm:$0xff] %v1174
                %v1176 = vld [vmem:[%s1170 + $0x10] sm:$0xff]
                %1177 = vst [vmem:[%s1171 + $0x10] sm:$0xff] %v1176
                %v1178 = vld [vmem:[%s1170 + $0x18] sm:$0xff]
                %1179 = vst [vmem:[%s1171 + $0x18] sm:$0xff] %v1178
                %v1180 = vld [vmem:[%s1170 + $0x20] sm:$0xff]
                %1181 = vst [vmem:[%s1171 + $0x20] sm:$0xff] %v1180
                %v1182 = vld [vmem:[%s1170 + $0x28] sm:$0xff]
                %1183 = vst [vmem:[%s1171 + $0x28] sm:$0xff] %v1182
                %v1184 = vld [vmem:[%s1170 + $0x30] sm:$0xff]
                %1185 = vst [vmem:[%s1171 + $0x30] sm:$0xff] %v1184
                %v1186 = vld [vmem:[%s1170 + $0x38] sm:$0xff]
                %1187 = vst [vmem:[%s1171 + $0x38] sm:$0xff] %v1186
                %v1188 = vld [vmem:[%s1170 + $0x40] sm:$0xff]
                %1189 = vst [vmem:[%s1171 + $0x40] sm:$0xff] %v1188
                %v1190 = vld [vmem:[%s1170 + $0x48] sm:$0xff]
                %1191 = vst [vmem:[%s1171 + $0x48] sm:$0xff] %v1190
                %v1192 = vld [vmem:[%s1170 + $0x50] sm:$0xff]
                %1193 = vst [vmem:[%s1171 + $0x50] sm:$0xff] %v1192
                %v1194 = vld [vmem:[%s1170 + $0x58] sm:$0xff]
                %1195 = vst [vmem:[%s1171 + $0x58] sm:$0xff] %v1194
                %v1196 = vld [vmem:[%s1170 + $0x60] sm:$0xff]
                %1197 = vst [vmem:[%s1171 + $0x60] sm:$0xff] %v1196
                %v1198 = vld [vmem:[%s1170 + $0x68] sm:$0xff]
                %1199 = vst [vmem:[%s1171 + $0x68] sm:$0xff] %v1198
                %s1200 = sadd.s32 1, %s1169
                %p1201 = scmp.ge.s32.totalorder %s1200, %s1161
                %s1202 = scalar_select %p1201, 0, %s1200
                %s1203 = smul.u32 %s1202, 112
                %s1204 = smul.u32 %s1202, 112
                %s1205 = scalar_lea.vmem %s1141, %s1203 [#allocation2]
                %s1206 = scalar_lea.vmem %s1152, %s1204
              $region77: #{tpu_custom_call.1} parent=71 // loop_footer
                %s1166 = sadd.s32 %s1164, 1
              $region78: #{tpu_custom_call.1} parent=71 // loop_footer_branch
                %1163 = sbr.rel target = $region74
              $region79: #{tpu_custom_call.1} parent=71 // loop_exit
                _
              %s1207 = sdiv.u32.pop %s1148, 14
              %s1208 = srem.u32.pop %s1148, 14
              %s1209 = smul.u32 %s1207, 14
              %s1210 = smul.u32 8, %s1209
              %s1211 = scalar_lea.vmem %s1141, %s1210 [#allocation2]
              %s1212 = smul.u32 8, %s1209
              %s1213 = scalar_lea.vmem %s1152, %s1212
              // While loop
              $region80: #{tpu_custom_call.1} parent=71 // loop_pre_header
                _
              $region81: #{tpu_custom_call.1} parent=71 // loop_header
                %s1215 = sphi 0, %s1217
                %p1216 = scmp.ge.s32.totalorder %s1215, %s1208
                %s1220 = sphi 0, %s1227
                %s1221 = sphi %s1211, %s1230
                %s1222 = sphi %s1213, %s1231
              $region82: #{tpu_custom_call.1} parent=71 // loop_header_branch
                %1219 = sbr.rel (%p1216) target = $region86
              $region83: #{tpu_custom_call.1} parent=71 // loop_body
                %v1223 = vld [vmem:[%s1221] sm:$0xff]
                %1224 = vst [vmem:[%s1222] sm:$0xff] %v1223
                %s1225 = sadd.s32 1, %s1220
                %p1226 = scmp.ge.s32.totalorder %s1225, %s1208
                %s1227 = scalar_select %p1226, 0, %s1225
                %s1228 = smul.u32 %s1227, 8
                %s1229 = smul.u32 %s1227, 8
                %s1230 = scalar_lea.vmem %s1211, %s1228 [#allocation2]
                %s1231 = scalar_lea.vmem %s1213, %s1229
              $region84: #{tpu_custom_call.1} parent=71 // loop_footer
                %s1217 = sadd.s32 %s1215, 1
              $region85: #{tpu_custom_call.1} parent=71 // loop_footer_branch
                %1214 = sbr.rel target = $region81
              $region86: #{tpu_custom_call.1} parent=71 // loop_exit
                _
            $region72: #{tpu_custom_call.1} parent=63 // pred_fallthru
              _
          $region64: #{tpu_custom_call.1} parent=59 // pred_fallthru
            _
          %1307 = vnop
        $region60: #{tpu_custom_call.1} parent=55 // pred_fallthru
          _
      $region56: #{tpu_custom_call.1} parent=5 // pred_fallthru
        _
      %p1308 = scmp.le.s32.totalorder 2, %s15
      // Predicated region
      $region109: #{tpu_custom_call.1} parent=5 // pred_check
        %p1309 = pneg %p1308
      $region110: #{tpu_custom_call.1} parent=5 // pred_check_branch
        %1311 = sbr.rel (%p1309) target = $region112
      $region111: #{tpu_custom_call.1} parent=5 // pred_region
        %s1312 = ssub.s32 %s15, 2
        // Predicated region
        $region113: #{tpu_custom_call.1} parent=111 // pred_check
          %p1313 = pneg %p238
        $region114: #{tpu_custom_call.1} parent=111 // pred_check_branch
          %1315 = sbr.rel (%p1313) target = $region116
        $region115: #{tpu_custom_call.1} parent=111 // pred_region
          %s1316 = sand.u32 %s223, 1
          %s1317 = sand.u32 %s223, 1
          %s1318 = smul.addr %s1317, 112
          %s1319 = scalar_lea.vmem [#allocation2], %s1318
        $region116: #{tpu_custom_call.1} parent=111 // pred_fallthru
          _
      $region112: #{tpu_custom_call.1} parent=5 // pred_fallthru
        _
    $region6: #{tpu_custom_call.1} parent=1 // loop_footer
      %s19 = sadd.s32 1, %s15
    $region7: #{tpu_custom_call.1} parent=1 // loop_footer_branch
      %14 = sbr.rel target = $region3
    $region8: #{tpu_custom_call.1} parent=1 // loop_exit
      _

</llo_original>
